<compile_context>
chip_gen: v5e
topology: v5e:2x2
jax: 0.10.0
libtpu: 0.0.40
codegen_flags: <defaults>
</compile_context>

<pallas_src>
import functools
import math

import jax
import jax.numpy as jnp
import numpy as np
from jax.experimental import pallas as pl
from jax.experimental.pallas import tpu as pltpu


# ----------------------------------------------------------------------------
# Fused decoder-layer kernel (grid = (batch,))
# ----------------------------------------------------------------------------
def _decoder_layer_kernel(
    trg_ref, src_ref, tbias_ref, sbias_ref,
    sa_wqkv_ref, sa_bqkv_ref, sa_wo_ref, sa_bo_ref,
    ea_wq_ref, ea_bq_ref, ea_wkv_ref, ea_bkv_ref, ea_wo_ref, ea_bo_ref,
    ff_w1_ref, ff_b1_ref, ff_w2_ref, ff_b2_ref,
    ln_g_ref, ln_b_ref,
    *out_refs, n_heads, scale, eps, return_attn, return_ff):
    H = trg_ref.shape[-1]
    dk = H // n_heads

    out_ref = out_refs[0]
    sa_p_ref = ea_p_ref = ff_ref = None
    nxt = 1
    if return_attn:
        sa_p_ref, ea_p_ref = out_refs[nxt], out_refs[nxt + 1]
        nxt += 2
    if return_ff:
        ff_ref = out_refs[nxt]

    ln_g = ln_g_ref[...]          # [4, H]
    ln_b = ln_b_ref[...]          # [4, H]

    def layer_norm(x, i):
        mu = jnp.mean(x, axis=-1, keepdims=True)
        var = jnp.mean(jnp.square(x - mu), axis=-1, keepdims=True)
        xn = (x - mu) * jax.lax.rsqrt(var + eps)
        return xn * ln_g[i:i + 1, :] + ln_b[i:i + 1, :]

    def proj_t(w_ref, b_ref, x):
        # Transposed projection: (x @ W)^T = W^T @ x^T  ->  [out_dim, rows].
        # w_ref holds W^T ([out, in]); contracting the last dim of both
        # operands is the MXU-native A @ B^T form.
        y = jax.lax.dot_general(
            w_ref[...], x.astype(jnp.bfloat16),
            (((1,), (1,)), ((), ())), preferred_element_type=jnp.float32)
        return y + b_ref[...]

    def attention(qT, kT, vT, bias, p_ref):
        # qT: [H, Tq], kT/vT: [H, Sk]  (f32, transposed, bias already added)
        # bias: [Tq, Sk] additive (0 keep / -1e9 masked), bf16.
        Tq = qT.shape[-1]
        Sk = kT.shape[-1]
        # Head-major views: reshapes only split the leading (sublane) dim.
        qh = jnp.swapaxes(qT.reshape(n_heads, dk, Tq), 1, 2)   # [nH, Tq, dk]
        kh = kT.reshape(n_heads, dk, Sk)                       # [nH, dk, Sk]
        vh = vT.reshape(n_heads, dk, Sk)                       # [nH, dk, Sk]
        s = jax.lax.dot_general(                               # [nH, Tq, Sk]
            qh.astype(jnp.bfloat16), kh.astype(jnp.bfloat16),
            (((2,), (1,)), ((0,), (0,))),
            preferred_element_type=jnp.float32)
        s = s * scale + bias[None].astype(jnp.float32)
        m = jnp.max(s, axis=-1, keepdims=True)
        e = jnp.exp(s - m)
        p = e * pl.reciprocal(jnp.sum(e, axis=-1, keepdims=True), approx=True)
        if p_ref is not None:
            p_ref[0] = p.astype(p_ref.dtype)                   # single bf16 store
        return jax.lax.dot_general(                            # [nH, Tq, dk]
            p.astype(jnp.bfloat16), vh.astype(jnp.bfloat16),
            (((2,), (2,)), ((0,), (0,))),
            preferred_element_type=jnp.float32)

    def heads_out(ctx, wo_ref, bo_ref):
        # ctx: [nH, T, dk]; wo_ref: [nH, dk, H]  ->  [T, H] (sum over heads).
        oh = jax.lax.dot_general(
            ctx.astype(jnp.bfloat16), wo_ref[...],
            (((2,), (1,)), ((0,), (0,))),
            preferred_element_type=jnp.float32)                # [nH, T, H]
        return jnp.sum(oh, axis=0) + bo_ref[...]

    trg = trg_ref[0]          # [T, H] f32
    src = src_ref[0]          # [S, H] f32

    # --- sublayer 1: LN1 -> masked self-attention -> residual ----------------
    z = layer_norm(trg, 0)
    qkvT = proj_t(sa_wqkv_ref, sa_bqkv_ref, z)                 # [3H, T]
    ctx = attention(qkvT[0:H], qkvT[H:2 * H], qkvT[2 * H:3 * H],
                    tbias_ref[0], sa_p_ref)
    trg = trg + heads_out(ctx, sa_wo_ref, sa_bo_ref)

    # --- sublayer 2: LN2 -> encoder-decoder attention -> residual ------------
    z = layer_norm(trg, 1)
    qT = proj_t(ea_wq_ref, ea_bq_ref, z)                       # [H, T]
    kvT = proj_t(ea_wkv_ref, ea_bkv_ref, src)                  # [2H, S]
    ctx = attention(qT, kvT[0:H], kvT[H:2 * H], sbias_ref[0], ea_p_ref)
    trg = trg + heads_out(ctx, ea_wo_ref, ea_bo_ref)

    # --- sublayer 3: LN3 -> positionwise feed-forward -> residual ------------
    z = layer_norm(trg, 2)
    h1 = jnp.maximum(
        jnp.dot(z.astype(jnp.bfloat16), ff_w1_ref[...],
                preferred_element_type=jnp.float32) + ff_b1_ref[...], 0.0)
    ff = jnp.dot(h1.astype(jnp.bfloat16), ff_w2_ref[...],
                 preferred_element_type=jnp.float32) + ff_b2_ref[...]
    if ff_ref is not None:
        ff_ref[0] = ff
    trg = trg + ff

    # --- final LayerNorm4 -----------------------------------------------------
    out_ref[0] = layer_norm(trg, 3)


# ----------------------------------------------------------------------------
# Wrapper
# ----------------------------------------------------------------------------
def decoder_layer_forward(trg, src, trg_mask, src_mask, p, *,
                          n_heads, return_attn=True, return_ff=True, eps=1e-5):
    B, T, H = trg.shape
    S = src.shape[1]
    PF = p["ff_w1"].shape[1]
    assert H % n_heads == 0
    dk = H // n_heads
    scale = 1.0 / math.sqrt(dk)

    # Masks -> bf16 additive biases (0 keep / -1e9 masked): halves mask DMA.
    tbias = ((trg_mask.astype(jnp.float32) - 1.0) * 1e9).astype(jnp.bfloat16)
    sbias = ((src_mask.astype(jnp.float32) - 1.0) * 1e9).astype(jnp.bfloat16)

    bf16 = jnp.bfloat16
    # Kernel-friendly weight layouts (one-time, outside the kernel):
    #   * projection weights transposed [out, in] so W^T @ z^T yields
    #     head-major activations via free leading-dim reshapes,
    #   * output-projection weights reshaped per-head [nH, dk, H].
    sa_wqkvT = p["sa_wqkv"].T.astype(bf16)                  # [3H, H]
    sa_bqkvT = p["sa_bqkv"].reshape(3 * H, 1)               # [3H, 1]
    sa_wo3 = p["sa_wo"].reshape(n_heads, dk, H).astype(bf16)
    ea_wqT = p["ea_wq"].T.astype(bf16)                      # [H, H]
    ea_bqT = p["ea_bq"].reshape(H, 1)
    ea_wkvT = p["ea_wkv"].T.astype(bf16)                    # [2H, H]
    ea_bkvT = p["ea_bkv"].reshape(2 * H, 1)
    ea_wo3 = p["ea_wo"].reshape(n_heads, dk, H).astype(bf16)
    ff_w1 = p["ff_w1"].astype(bf16)
    ff_w2 = p["ff_w2"].astype(bf16)

    def const_spec(shape):
        return pl.BlockSpec(shape, lambda b, _n=len(shape): (0,) * _n)

    in_specs = [
        pl.BlockSpec((1, T, H), lambda b: (b, 0, 0)),       # trg
        pl.BlockSpec((1, S, H), lambda b: (b, 0, 0)),       # src
        pl.BlockSpec((1, T, T), lambda b: (b, 0, 0)),       # self-attn bias (bf16)
        pl.BlockSpec((1, T, S), lambda b: (b, 0, 0)),       # cross-attn bias (bf16)
        const_spec((3 * H, H)),                             # sa_wqkv^T (bf16)
        const_spec((3 * H, 1)),                             # sa_bqkv^T
        const_spec((n_heads, dk, H)),                       # sa_wo per-head (bf16)
        const_spec((1, H)),                                 # sa_bo
        const_spec((H, H)),                                 # ea_wq^T (bf16)
        const_spec((H, 1)),                                 # ea_bq^T
        const_spec((2 * H, H)),                             # ea_wkv^T (bf16)
        const_spec((2 * H, 1)),                             # ea_bkv^T
        const_spec((n_heads, dk, H)),                       # ea_wo per-head (bf16)
        const_spec((1, H)),                                 # ea_bo
        const_spec((H, PF)),                                # ff_w1 (bf16)
        const_spec((1, PF)),                                # ff_b1
        const_spec((PF, H)),                                # ff_w2 (bf16)
        const_spec((1, H)),                                 # ff_b2
        const_spec((4, H)),                                 # ln gamma (4 LNs)
        const_spec((4, H)),                                 # ln beta
    ]

    out_shape = [jax.ShapeDtypeStruct((B, T, H), jnp.float32)]
    out_specs = [pl.BlockSpec((1, T, H), lambda b: (b, 0, 0))]
    if return_attn:
        out_shape += [jax.ShapeDtypeStruct((B, n_heads, T, T), jnp.bfloat16),
                      jax.ShapeDtypeStruct((B, n_heads, T, S), jnp.bfloat16)]
        out_specs += [pl.BlockSpec((1, n_heads, T, T), lambda b: (b, 0, 0, 0)),
                      pl.BlockSpec((1, n_heads, T, S), lambda b: (b, 0, 0, 0))]
    if return_ff:
        out_shape += [jax.ShapeDtypeStruct((B, T, H), jnp.float32)]
        out_specs += [pl.BlockSpec((1, T, H), lambda b: (b, 0, 0))]

    grid_spec = pltpu.PrefetchScalarGridSpec(
        num_scalar_prefetch=0, grid=(B,),
        in_specs=in_specs, out_specs=tuple(out_specs))

    outs = pl.pallas_call(
        functools.partial(_decoder_layer_kernel, n_heads=n_heads, scale=scale,
                          eps=eps, return_attn=return_attn, return_ff=return_ff),
        out_shape=tuple(out_shape),
        grid_spec=grid_spec,
        compiler_params=pltpu.CompilerParams(
            dimension_semantics=("parallel",),
            # 64 MiB: safe on v5e/v6e (128 MiB physical), == v7x physical;
            # raise toward ~100 MiB on v6e for large H / PF working sets.
            vmem_limit_bytes=64 * 1024 * 1024),
    )(trg, src, tbias, sbias,
      sa_wqkvT, sa_bqkvT, sa_wo3, p["sa_bo"],
      ea_wqT, ea_bqT, ea_wkvT, ea_bkvT, ea_wo3, p["ea_bo"],
      ff_w1, p["ff_b1"], ff_w2, p["ff_b2"],
      p["ln_g"], p["ln_b"])

    outs = list(outs)
    out = outs.pop(0)
    sa_reps, ea_reps = {}, {}
    if return_attn:
        sa_reps["attn"] = outs.pop(0)
        ea_reps["attn"] = outs.pop(0)
    if return_ff:
        ea_reps["feedforward"] = outs.pop(0)
    reps = {"self_attention": sa_reps, "encoder_attention": ea_reps}
    return out, reps


# ----------------------------------------------------------------------------
# Pure-JAX reference (f32) for correctness check
# ----------------------------------------------------------------------------
def _ln_ref(x, g, b, eps=1e-5):
    mu = jnp.mean(x, axis=-1, keepdims=True)
    var = jnp.mean(jnp.square(x - mu), axis=-1, keepdims=True)
    return (x - mu) / jnp.sqrt(var + eps) * g + b


def _mha_ref(q_in, kv_in, mask, wq, bq, wk, bk, wv, bv, wo, bo, n_heads):
    B, T, H = q_in.shape
    S = kv_in.shape[1]
    dk = H // n_heads
    scale = 1.0 / math.sqrt(dk)
    q = q_in @ wq + bq
    k = kv_in @ wk + bk
    v = kv_in @ wv + bv
    qh = q.reshape(B, T, n_heads, dk).transpose(0, 2, 1, 3)
    kh = k.reshape(B, S, n_heads, dk).transpose(0, 2, 1, 3)
    vh = v.reshape(B, S, n_heads, dk).transpose(0, 2, 1, 3)
    s = jnp.einsum("bhtd,bhsd->bhts", qh, kh) * scale
    s = jnp.where(mask[:, None, :, :] > 0, s, -1e10)
    prob = jax.nn.softmax(s, axis=-1)
    ctx = jnp.einsum("bhts,bhsd->bhtd", prob, vh)
    ctx = ctx.transpose(0, 2, 1, 3).reshape(B, T, H)
    return ctx @ wo + bo, prob


def decoder_layer_ref(trg, src, trg_mask, src_mask, p, *, n_heads, return_ff=True):
    H = trg.shape[-1]
    g, b = p["ln_g"], p["ln_b"]

    z = _ln_ref(trg, g[0], b[0])
    wq, wk, wv = p["sa_wqkv"][:, :H], p["sa_wqkv"][:, H:2 * H], p["sa_wqkv"][:, 2 * H:]
    bq, bk, bv = p["sa_bqkv"][:, :H], p["sa_bqkv"][:, H:2 * H], p["sa_bqkv"][:, 2 * H:]
    sa_out, sa_p = _mha_ref(z, z, trg_mask, wq, bq, wk, bk, wv, bv,
                            p["sa_wo"], p["sa_bo"], n_heads)
    trg = trg + sa_out

    z = _ln_ref(trg, g[1], b[1])
    wk, wv = p["ea_wkv"][:, :H], p["ea_wkv"][:, H:]
    bk, bv = p["ea_bkv"][:, :H], p["ea_bkv"][:, H:]
    ea_out, ea_p = _mha_ref(z, src, src_mask, p["ea_wq"], p["ea_bq"],
                            wk, bk, wv, bv, p["ea_wo"], p["ea_bo"], n_heads)
    trg = trg + ea_out

    z = _ln_ref(trg, g[2], b[2])
    ff = jnp.maximum(z @ p["ff_w1"] + p["ff_b1"], 0.0) @ p["ff_w2"] + p["ff_b2"]
    trg = trg + ff

    out = _ln_ref(trg, g[3], b[3])
    sa_reps = {"attn": sa_p}
    ea_reps = {"attn": ea_p}
    if return_ff:
        ea_reps["feedforward"] = ff
    return out, {"self_attention": sa_reps, "encoder_attention": ea_reps}


# ----------------------------------------------------------------------------
# Deterministic parameter init (fused QKV / KV layouts)
# ----------------------------------------------------------------------------
def init_decoder_layer_params(key, H, n_heads, PF):
    ks = jax.random.split(key, 14)
    w = lambda k, s: jax.random.normal(k, s, jnp.float32) * 0.05
    return {
        "sa_wqkv": w(ks[0], (H, 3 * H)), "sa_bqkv": w(ks[1], (1, 3 * H)),
        "sa_wo": w(ks[2], (H, H)), "sa_bo": w(ks[3], (1, H)),
        "ea_wq": w(ks[4], (H, H)), "ea_bq": w(ks[5], (1, H)),
        "ea_wkv": w(ks[6], (H, 2 * H)), "ea_bkv": w(ks[7], (1, 2 * H)),
        "ea_wo": w(ks[8], (H, H)), "ea_bo": w(ks[9], (1, H)),
        "ff_w1": w(ks[10], (H, PF)), "ff_b1": w(ks[11], (1, PF)),
        "ff_w2": w(ks[12], (PF, H)), "ff_b2": w(ks[13], (1, H)),
        "ln_g": jnp.ones((4, H), jnp.float32),
        "ln_b": jnp.zeros((4, H), jnp.float32),
    }


# ----------------------------------------------------------------------------
if __name__ == "__main__":
    B, T, S, H, NH, PF = 2, 8, 8, 32, 4, 64

    key = jax.random.PRNGKey(0)
    k_trg, k_src, k_par = jax.random.split(key, 3)
    trg = jax.random.normal(k_trg, (B, T, H), jnp.float32)
    src = jax.random.normal(k_src, (B, S, H), jnp.float32)

    # causal target mask [B, T, T]; source padding mask broadcast to [B, T, S]
    trg_mask = jnp.broadcast_to(jnp.tril(jnp.ones((T, T), jnp.float32)), (B, T, T))
    src_valid = jnp.ones((B, S), jnp.float32).at[1, S - 2:].set(0.0)
    src_mask = jnp.broadcast_to(src_valid[:, None, :], (B, T, S)).astype(jnp.float32)

    params = init_decoder_layer_params(k_par, H, NH, PF)

    out, reps = decoder_layer_forward(trg, src, trg_mask, src_mask, params,
                                      n_heads=NH, return_attn=True, return_ff=True)
    out = jax.block_until_ready(out)
    reps = jax.tree_util.tree_map(jax.block_until_ready, reps)

    out_ref, reps_ref = decoder_layer_ref(trg, src, trg_mask, src_mask, params,
                                          n_heads=NH, return_ff=True)

    # bf16 matmul operands / bf16 prob storage / approx reciprocal vs f32 ref.
    tol = dict(rtol=2e-2, atol=2e-2)
    np.testing.assert_allclose(np.asarray(out), np.asarray(out_ref), **tol)
    np.testing.assert_allclose(
        np.asarray(reps["self_attention"]["attn"].astype(jnp.float32)),
        np.asarray(reps_ref["self_attention"]["attn"]), **tol)
    np.testing.assert_allclose(
        np.asarray(reps["encoder_attention"]["attn"].astype(jnp.float32)),
        np.asarray(reps_ref["encoder_attention"]["attn"]), **tol)
    np.testing.assert_allclose(
        np.asarray(reps["encoder_attention"]["feedforward"]),
        np.asarray(reps_ref["encoder_attention"]["feedforward"]), **tol)

    assert out.shape == (B, T, H)
    print("KERNEL_OK")
</pallas_src>

<mosaic_0001>
module attributes {stable_mosaic.version = 11 : i64} {
  func.func @_decoder_layer_kernel(%arg0: i32, %arg1: memref<1x8x32xf32, #tpu.memory_space<vmem>>, %arg2: memref<1x8x32xf32, #tpu.memory_space<vmem>>, %arg3: memref<1x8x8xbf16, #tpu.memory_space<vmem>>, %arg4: memref<1x8x8xbf16, #tpu.memory_space<vmem>>, %arg5: memref<96x32xbf16, #tpu.memory_space<vmem>>, %arg6: memref<96x1xf32, #tpu.memory_space<vmem>>, %arg7: memref<4x8x32xbf16, #tpu.memory_space<vmem>>, %arg8: memref<1x32xf32, #tpu.memory_space<vmem>>, %arg9: memref<32x32xbf16, #tpu.memory_space<vmem>>, %arg10: memref<32x1xf32, #tpu.memory_space<vmem>>, %arg11: memref<64x32xbf16, #tpu.memory_space<vmem>>, %arg12: memref<64x1xf32, #tpu.memory_space<vmem>>, %arg13: memref<4x8x32xbf16, #tpu.memory_space<vmem>>, %arg14: memref<1x32xf32, #tpu.memory_space<vmem>>, %arg15: memref<32x64xbf16, #tpu.memory_space<vmem>>, %arg16: memref<1x64xf32, #tpu.memory_space<vmem>>, %arg17: memref<64x32xbf16, #tpu.memory_space<vmem>>, %arg18: memref<1x32xf32, #tpu.memory_space<vmem>>, %arg19: memref<4x32xf32, #tpu.memory_space<vmem>>, %arg20: memref<4x32xf32, #tpu.memory_space<vmem>>, %arg21: memref<1x8x32xf32, #tpu.memory_space<vmem>>, %arg22: memref<1x4x8x8xbf16, #tpu.memory_space<vmem>>, %arg23: memref<1x4x8x8xbf16, #tpu.memory_space<vmem>>, %arg24: memref<1x8x32xf32, #tpu.memory_space<vmem>>) attributes {dimension_semantics = [#tpu.dimension_semantics<parallel>], iteration_bounds = array<i64: 2>, scalar_prefetch = 0 : i64, scratch_operands = 0 : i64, tpu.core_type = #tpu.core_type<tc>, window_params = [{transform_indices = @transform_0, window_bounds = array<i64: 1, 8, 32>}, {transform_indices = @transform_1, window_bounds = array<i64: 1, 8, 32>}, {transform_indices = @transform_2, window_bounds = array<i64: 1, 8, 8>}, {transform_indices = @transform_3, window_bounds = array<i64: 1, 8, 8>}, {pipeline_mode = #tpu.pipeline_mode<synchronous>, transform_indices = @transform_4, window_bounds = array<i64: 96, 32>}, {pipeline_mode = #tpu.pipeline_mode<synchronous>, transform_indices = @transform_5, window_bounds = array<i64: 96, 1>}, {pipeline_mode = #tpu.pipeline_mode<synchronous>, transform_indices = @transform_6, window_bounds = array<i64: 4, 8, 32>}, {pipeline_mode = #tpu.pipeline_mode<synchronous>, transform_indices = @transform_7, window_bounds = array<i64: 1, 32>}, {pipeline_mode = #tpu.pipeline_mode<synchronous>, transform_indices = @transform_8, window_bounds = array<i64: 32, 32>}, {pipeline_mode = #tpu.pipeline_mode<synchronous>, transform_indices = @transform_9, window_bounds = array<i64: 32, 1>}, {pipeline_mode = #tpu.pipeline_mode<synchronous>, transform_indices = @transform_10, window_bounds = array<i64: 64, 32>}, {pipeline_mode = #tpu.pipeline_mode<synchronous>, transform_indices = @transform_11, window_bounds = array<i64: 64, 1>}, {pipeline_mode = #tpu.pipeline_mode<synchronous>, transform_indices = @transform_12, window_bounds = array<i64: 4, 8, 32>}, {pipeline_mode = #tpu.pipeline_mode<synchronous>, transform_indices = @transform_13, window_bounds = array<i64: 1, 32>}, {pipeline_mode = #tpu.pipeline_mode<synchronous>, transform_indices = @transform_14, window_bounds = array<i64: 32, 64>}, {pipeline_mode = #tpu.pipeline_mode<synchronous>, transform_indices = @transform_15, window_bounds = array<i64: 1, 64>}, {pipeline_mode = #tpu.pipeline_mode<synchronous>, transform_indices = @transform_16, window_bounds = array<i64: 64, 32>}, {pipeline_mode = #tpu.pipeline_mode<synchronous>, transform_indices = @transform_17, window_bounds = array<i64: 1, 32>}, {pipeline_mode = #tpu.pipeline_mode<synchronous>, transform_indices = @transform_18, window_bounds = array<i64: 4, 32>}, {pipeline_mode = #tpu.pipeline_mode<synchronous>, transform_indices = @transform_19, window_bounds = array<i64: 4, 32>}, {transform_indices = @transform_20, window_bounds = array<i64: 1, 8, 32>}, {transform_indices = @transform_21, window_bounds = array<i64: 1, 4, 8, 8>}, {transform_indices = @transform_22, window_bounds = array<i64: 1, 4, 8, 8>}, {transform_indices = @transform_23, window_bounds = array<i64: 1, 8, 32>}]} {
    %c0 = arith.constant 0 : index
    %c0_0 = arith.constant 0 : index
    %0 = vector.load %arg19[%c0, %c0_0] : memref<4x32xf32, #tpu.memory_space<vmem>>, vector<4x32xf32>
    %c0_1 = arith.constant 0 : index
    %c0_2 = arith.constant 0 : index
    %1 = vector.load %arg20[%c0_1, %c0_2] : memref<4x32xf32, #tpu.memory_space<vmem>>, vector<4x32xf32>
    %c0_3 = arith.constant 0 : index
    %c0_4 = arith.constant 0 : index
    %c0_5 = arith.constant 0 : index
    %2 = vector.load %arg1[%c0_3, %c0_4, %c0_5] : memref<1x8x32xf32, #tpu.memory_space<vmem>>, vector<1x8x32xf32>
    %3 = vector.shape_cast %2 : vector<1x8x32xf32> to vector<8x32xf32>
    %c0_6 = arith.constant 0 : index
    %c0_7 = arith.constant 0 : index
    %c0_8 = arith.constant 0 : index
    %4 = vector.load %arg2[%c0_6, %c0_7, %c0_8] : memref<1x8x32xf32, #tpu.memory_space<vmem>>, vector<1x8x32xf32>
    %5 = vector.shape_cast %4 : vector<1x8x32xf32> to vector<8x32xf32>
    %cst = arith.constant dense<0.000000e+00> : vector<8xf32>
    %6 = vector.multi_reduction <add>, %3, %cst [1] : vector<8x32xf32> to vector<8xf32>
    %7 = vector.shape_cast %6 : vector<8xf32> to vector<8x1xf32>
    %cst_9 = arith.constant 3.200000e+01 : f32
    %8 = vector.broadcast %cst_9 : f32 to vector<8x1xf32>
    %9 = arith.divf %7, %8 : vector<8x1xf32>
    %10 = vector.broadcast %9 : vector<8x1xf32> to vector<8x32xf32>
    %11 = arith.subf %3, %10 : vector<8x32xf32>
    %12 = arith.mulf %11, %11 : vector<8x32xf32>
    %cst_10 = arith.constant dense<0.000000e+00> : vector<8xf32>
    %13 = vector.multi_reduction <add>, %12, %cst_10 [1] : vector<8x32xf32> to vector<8xf32>
    %14 = vector.shape_cast %13 : vector<8xf32> to vector<8x1xf32>
    %cst_11 = arith.constant 3.200000e+01 : f32
    %15 = vector.broadcast %cst_11 : f32 to vector<8x1xf32>
    %16 = arith.divf %14, %15 : vector<8x1xf32>
    %17 = vector.broadcast %9 : vector<8x1xf32> to vector<8x32xf32>
    %18 = arith.subf %3, %17 : vector<8x32xf32>
    %cst_12 = arith.constant 9.99999974E-6 : f32
    %19 = vector.broadcast %cst_12 : f32 to vector<8x1xf32>
    %20 = arith.addf %16, %19 : vector<8x1xf32>
    %21 = math.rsqrt %20 : vector<8x1xf32>
    %22 = vector.broadcast %21 : vector<8x1xf32> to vector<8x32xf32>
    %23 = arith.mulf %18, %22 : vector<8x32xf32>
    %24 = vector.extract_strided_slice %0 {offsets = [0, 0], sizes = [1, 32], strides = [1, 1]} : vector<4x32xf32> to vector<1x32xf32>
    %25 = vector.broadcast %24 : vector<1x32xf32> to vector<8x32xf32>
    %26 = arith.mulf %23, %25 : vector<8x32xf32>
    %27 = vector.extract_strided_slice %1 {offsets = [0, 0], sizes = [1, 32], strides = [1, 1]} : vector<4x32xf32> to vector<1x32xf32>
    %28 = vector.broadcast %27 : vector<1x32xf32> to vector<8x32xf32>
    %29 = arith.addf %26, %28 : vector<8x32xf32>
    %c0_13 = arith.constant 0 : index
    %c0_14 = arith.constant 0 : index
    %30 = vector.load %arg5[%c0_13, %c0_14] : memref<96x32xbf16, #tpu.memory_space<vmem>>, vector<96x32xbf16>
    %31 = arith.truncf %29 : vector<8x32xf32> to vector<8x32xbf16>
    %cst_15 = arith.constant dense<0.000000e+00> : vector<96x8xf32>
    %32 = tpu.matmul %30, %31, %cst_15 {dimension_numbers = #tpu.dot_dimension_numbers<[1], [1], [0], [0], [0, 0, 1, 0], [], []>} : vector<96x32xbf16>, vector<8x32xbf16>, vector<96x8xf32> -> vector<96x8xf32>
    %c0_16 = arith.constant 0 : index
    %c0_17 = arith.constant 0 : index
    %33 = vector.load %arg6[%c0_16, %c0_17] : memref<96x1xf32, #tpu.memory_space<vmem>>, vector<96x1xf32>
    %34 = vector.broadcast %33 : vector<96x1xf32> to vector<96x8xf32>
    %35 = arith.addf %32, %34 : vector<96x8xf32>
    %36 = vector.extract_strided_slice %35 {offsets = [0, 0], sizes = [32, 8], strides = [1, 1]} : vector<96x8xf32> to vector<32x8xf32>
    %37 = vector.extract_strided_slice %35 {offsets = [32, 0], sizes = [32, 8], strides = [1, 1]} : vector<96x8xf32> to vector<32x8xf32>
    %38 = vector.extract_strided_slice %35 {offsets = [64, 0], sizes = [32, 8], strides = [1, 1]} : vector<96x8xf32> to vector<32x8xf32>
    %c0_18 = arith.constant 0 : index
    %c0_19 = arith.constant 0 : index
    %c0_20 = arith.constant 0 : index
    %39 = vector.load %arg3[%c0_18, %c0_19, %c0_20] : memref<1x8x8xbf16, #tpu.memory_space<vmem>>, vector<1x8x8xbf16>
    %40 = vector.shape_cast %39 : vector<1x8x8xbf16> to vector<8x8xbf16>
    %41 = vector.shape_cast %36 : vector<32x8xf32> to vector<4x8x8xf32>
    %42 = tpu.transpose %41, [0, 2, 1] : vector<4x8x8xf32> -> vector<4x8x8xf32>
    %43 = vector.shape_cast %37 : vector<32x8xf32> to vector<4x8x8xf32>
    %44 = vector.shape_cast %38 : vector<32x8xf32> to vector<4x8x8xf32>
    %45 = arith.truncf %42 : vector<4x8x8xf32> to vector<4x8x8xbf16>
    %46 = arith.truncf %43 : vector<4x8x8xf32> to vector<4x8x8xbf16>
    %cst_21 = arith.constant dense<0.000000e+00> : vector<4x8x8xf32>
    %47 = tpu.matmul %45, %46, %cst_21 {dimension_numbers = #tpu.dot_dimension_numbers<[2], [1], [1], [2], [0, 0, 0, 1, 1, 2], [0], [0]>} : vector<4x8x8xbf16>, vector<4x8x8xbf16>, vector<4x8x8xf32> -> vector<4x8x8xf32>
    %cst_22 = arith.constant 0.353553385 : f32
    %48 = vector.broadcast %cst_22 : f32 to vector<4x8x8xf32>
    %49 = arith.mulf %47, %48 : vector<4x8x8xf32>
    %50 = vector.shape_cast %40 : vector<8x8xbf16> to vector<1x8x8xbf16>
    %51 = arith.extf %50 : vector<1x8x8xbf16> to vector<1x8x8xf32>
    %52 = vector.broadcast %51 : vector<1x8x8xf32> to vector<4x8x8xf32>
    %53 = arith.addf %49, %52 : vector<4x8x8xf32>
    %cst_23 = arith.constant dense<0xFF800000> : vector<4x8xf32>
    %54 = vector.multi_reduction <maximumf>, %53, %cst_23 [2] : vector<4x8x8xf32> to vector<4x8xf32>
    %55 = vector.shape_cast %54 : vector<4x8xf32> to vector<4x8x1xf32>
    %56 = vector.broadcast %55 : vector<4x8x1xf32> to vector<4x8x8xf32>
    %57 = arith.subf %53, %56 : vector<4x8x8xf32>
    %58 = math.exp %57 : vector<4x8x8xf32>
    %cst_24 = arith.constant dense<0.000000e+00> : vector<4x8xf32>
    %59 = vector.multi_reduction <add>, %58, %cst_24 [2] : vector<4x8x8xf32> to vector<4x8xf32>
    %60 = vector.shape_cast %59 : vector<4x8xf32> to vector<4x8x1xf32>
    %61 = tpu.reciprocal %60 {approx = true} : vector<4x8x1xf32> -> vector<4x8x1xf32>
    %62 = vector.broadcast %61 : vector<4x8x1xf32> to vector<4x8x8xf32>
    %63 = arith.mulf %58, %62 : vector<4x8x8xf32>
    %64 = arith.truncf %63 : vector<4x8x8xf32> to vector<4x8x8xbf16>
    %c0_25 = arith.constant 0 : index
    %c0_26 = arith.constant 0 : index
    %c0_27 = arith.constant 0 : index
    %c0_28 = arith.constant 0 : index
    %65 = vector.load %arg22[%c0_25, %c0_26, %c0_27, %c0_28] : memref<1x4x8x8xbf16, #tpu.memory_space<vmem>>, vector<1x4x8x8xbf16>
    %66 = vector.shape_cast %65 : vector<1x4x8x8xbf16> to vector<4x8x8xbf16>
    %67 = vector.shape_cast %64 : vector<4x8x8xbf16> to vector<1x4x8x8xbf16>
    tpu.vector_store %arg22[%c0_25, %c0_26, %c0_27, %c0_28], %67 {strides = array<i32>} : memref<1x4x8x8xbf16, #tpu.memory_space<vmem>>, vector<1x4x8x8xbf16>,
    %68 = arith.truncf %63 : vector<4x8x8xf32> to vector<4x8x8xbf16>
    %69 = arith.truncf %44 : vector<4x8x8xf32> to vector<4x8x8xbf16>
    %cst_29 = arith.constant dense<0.000000e+00> : vector<4x8x8xf32>
    %70 = tpu.matmul %68, %69, %cst_29 {dimension_numbers = #tpu.dot_dimension_numbers<[2], [2], [1], [1], [0, 0, 0, 1, 1, 1], [0], [0]>} : vector<4x8x8xbf16>, vector<4x8x8xbf16>, vector<4x8x8xf32> -> vector<4x8x8xf32>
    %71 = arith.truncf %70 : vector<4x8x8xf32> to vector<4x8x8xbf16>
    %c0_30 = arith.constant 0 : index
    %c0_31 = arith.constant 0 : index
    %c0_32 = arith.constant 0 : index
    %72 = vector.load %arg7[%c0_30, %c0_31, %c0_32] : memref<4x8x32xbf16, #tpu.memory_space<vmem>>, vector<4x8x32xbf16>
    %cst_33 = arith.constant dense<0.000000e+00> : vector<4x8x32xf32>
    %73 = tpu.matmul %71, %72, %cst_33 {dimension_numbers = #tpu.dot_dimension_numbers<[2], [1], [1], [2], [0, 0, 0, 1, 1, 2], [0], [0]>} : vector<4x8x8xbf16>, vector<4x8x32xbf16>, vector<4x8x32xf32> -> vector<4x8x32xf32>
    %cst_34 = arith.constant dense<0.000000e+00> : vector<8x32xf32>
    %74 = vector.multi_reduction <add>, %73, %cst_34 [0] : vector<4x8x32xf32> to vector<8x32xf32>
    %c0_35 = arith.constant 0 : index
    %c0_36 = arith.constant 0 : index
    %75 = vector.load %arg8[%c0_35, %c0_36] : memref<1x32xf32, #tpu.memory_space<vmem>>, vector<1x32xf32>
    %76 = vector.broadcast %75 : vector<1x32xf32> to vector<8x32xf32>
    %77 = arith.addf %74, %76 : vector<8x32xf32>
    %78 = arith.addf %3, %77 : vector<8x32xf32>
    %cst_37 = arith.constant dense<0.000000e+00> : vector<8xf32>
    %79 = vector.multi_reduction <add>, %78, %cst_37 [1] : vector<8x32xf32> to vector<8xf32>
    %80 = vector.shape_cast %79 : vector<8xf32> to vector<8x1xf32>
    %cst_38 = arith.constant 3.200000e+01 : f32
    %81 = vector.broadcast %cst_38 : f32 to vector<8x1xf32>
    %82 = arith.divf %80, %81 : vector<8x1xf32>
    %83 = vector.broadcast %82 : vector<8x1xf32> to vector<8x32xf32>
    %84 = arith.subf %78, %83 : vector<8x32xf32>
    %85 = arith.mulf %84, %84 : vector<8x32xf32>
    %cst_39 = arith.constant dense<0.000000e+00> : vector<8xf32>
    %86 = vector.multi_reduction <add>, %85, %cst_39 [1] : vector<8x32xf32> to vector<8xf32>
    %87 = vector.shape_cast %86 : vector<8xf32> to vector<8x1xf32>
    %cst_40 = arith.constant 3.200000e+01 : f32
    %88 = vector.broadcast %cst_40 : f32 to vector<8x1xf32>
    %89 = arith.divf %87, %88 : vector<8x1xf32>
    %90 = vector.broadcast %82 : vector<8x1xf32> to vector<8x32xf32>
    %91 = arith.subf %78, %90 : vector<8x32xf32>
    %cst_41 = arith.constant 9.99999974E-6 : f32
    %92 = vector.broadcast %cst_41 : f32 to vector<8x1xf32>
    %93 = arith.addf %89, %92 : vector<8x1xf32>
    %94 = math.rsqrt %93 : vector<8x1xf32>
    %95 = vector.broadcast %94 : vector<8x1xf32> to vector<8x32xf32>
    %96 = arith.mulf %91, %95 : vector<8x32xf32>
    %97 = vector.extract_strided_slice %0 {offsets = [1, 0], sizes = [1, 32], strides = [1, 1]} : vector<4x32xf32> to vector<1x32xf32>
    %98 = vector.broadcast %97 : vector<1x32xf32> to vector<8x32xf32>
    %99 = arith.mulf %96, %98 : vector<8x32xf32>
    %100 = vector.extract_strided_slice %1 {offsets = [1, 0], sizes = [1, 32], strides = [1, 1]} : vector<4x32xf32> to vector<1x32xf32>
    %101 = vector.broadcast %100 : vector<1x32xf32> to vector<8x32xf32>
    %102 = arith.addf %99, %101 : vector<8x32xf32>
    %c0_42 = arith.constant 0 : index
    %c0_43 = arith.constant 0 : index
    %103 = vector.load %arg9[%c0_42, %c0_43] : memref<32x32xbf16, #tpu.memory_space<vmem>>, vector<32x32xbf16>
    %104 = arith.truncf %102 : vector<8x32xf32> to vector<8x32xbf16>
    %cst_44 = arith.constant dense<0.000000e+00> : vector<32x8xf32>
    %105 = tpu.matmul %103, %104, %cst_44 {dimension_numbers = #tpu.dot_dimension_numbers<[1], [1], [0], [0], [0, 0, 1, 0], [], []>} : vector<32x32xbf16>, vector<8x32xbf16>, vector<32x8xf32> -> vector<32x8xf32>
    %c0_45 = arith.constant 0 : index
    %c0_46 = arith.constant 0 : index
    %106 = vector.load %arg10[%c0_45, %c0_46] : memref<32x1xf32, #tpu.memory_space<vmem>>, vector<32x1xf32>
    %107 = vector.broadcast %106 : vector<32x1xf32> to vector<32x8xf32>
    %108 = arith.addf %105, %107 : vector<32x8xf32>
    %c0_47 = arith.constant 0 : index
    %c0_48 = arith.constant 0 : index
    %109 = vector.load %arg11[%c0_47, %c0_48] : memref<64x32xbf16, #tpu.memory_space<vmem>>, vector<64x32xbf16>
    %110 = arith.truncf %5 : vector<8x32xf32> to vector<8x32xbf16>
    %cst_49 = arith.constant dense<0.000000e+00> : vector<64x8xf32>
    %111 = tpu.matmul %109, %110, %cst_49 {dimension_numbers = #tpu.dot_dimension_numbers<[1], [1], [0], [0], [0, 0, 1, 0], [], []>} : vector<64x32xbf16>, vector<8x32xbf16>, vector<64x8xf32> -> vector<64x8xf32>
    %c0_50 = arith.constant 0 : index
    %c0_51 = arith.constant 0 : index
    %112 = vector.load %arg12[%c0_50, %c0_51] : memref<64x1xf32, #tpu.memory_space<vmem>>, vector<64x1xf32>
    %113 = vector.broadcast %112 : vector<64x1xf32> to vector<64x8xf32>
    %114 = arith.addf %111, %113 : vector<64x8xf32>
    %115 = vector.extract_strided_slice %114 {offsets = [0, 0], sizes = [32, 8], strides = [1, 1]} : vector<64x8xf32> to vector<32x8xf32>
    %116 = vector.extract_strided_slice %114 {offsets = [32, 0], sizes = [32, 8], strides = [1, 1]} : vector<64x8xf32> to vector<32x8xf32>
    %c0_52 = arith.constant 0 : index
    %c0_53 = arith.constant 0 : index
    %c0_54 = arith.constant 0 : index
    %117 = vector.load %arg4[%c0_52, %c0_53, %c0_54] : memref<1x8x8xbf16, #tpu.memory_space<vmem>>, vector<1x8x8xbf16>
    %118 = vector.shape_cast %117 : vector<1x8x8xbf16> to vector<8x8xbf16>
    %119 = vector.shape_cast %108 : vector<32x8xf32> to vector<4x8x8xf32>
    %120 = tpu.transpose %119, [0, 2, 1] : vector<4x8x8xf32> -> vector<4x8x8xf32>
    %121 = vector.shape_cast %115 : vector<32x8xf32> to vector<4x8x8xf32>
    %122 = vector.shape_cast %116 : vector<32x8xf32> to vector<4x8x8xf32>
    %123 = arith.truncf %120 : vector<4x8x8xf32> to vector<4x8x8xbf16>
    %124 = arith.truncf %121 : vector<4x8x8xf32> to vector<4x8x8xbf16>
    %cst_55 = arith.constant dense<0.000000e+00> : vector<4x8x8xf32>
    %125 = tpu.matmul %123, %124, %cst_55 {dimension_numbers = #tpu.dot_dimension_numbers<[2], [1], [1], [2], [0, 0, 0, 1, 1, 2], [0], [0]>} : vector<4x8x8xbf16>, vector<4x8x8xbf16>, vector<4x8x8xf32> -> vector<4x8x8xf32>
    %cst_56 = arith.constant 0.353553385 : f32
    %126 = vector.broadcast %cst_56 : f32 to vector<4x8x8xf32>
    %127 = arith.mulf %125, %126 : vector<4x8x8xf32>
    %128 = vector.shape_cast %118 : vector<8x8xbf16> to vector<1x8x8xbf16>
    %129 = arith.extf %128 : vector<1x8x8xbf16> to vector<1x8x8xf32>
    %130 = vector.broadcast %129 : vector<1x8x8xf32> to vector<4x8x8xf32>
    %131 = arith.addf %127, %130 : vector<4x8x8xf32>
    %cst_57 = arith.constant dense<0xFF800000> : vector<4x8xf32>
    %132 = vector.multi_reduction <maximumf>, %131, %cst_57 [2] : vector<4x8x8xf32> to vector<4x8xf32>
    %133 = vector.shape_cast %132 : vector<4x8xf32> to vector<4x8x1xf32>
    %134 = vector.broadcast %133 : vector<4x8x1xf32> to vector<4x8x8xf32>
    %135 = arith.subf %131, %134 : vector<4x8x8xf32>
    %136 = math.exp %135 : vector<4x8x8xf32>
    %cst_58 = arith.constant dense<0.000000e+00> : vector<4x8xf32>
    %137 = vector.multi_reduction <add>, %136, %cst_58 [2] : vector<4x8x8xf32> to vector<4x8xf32>
    %138 = vector.shape_cast %137 : vector<4x8xf32> to vector<4x8x1xf32>
    %139 = tpu.reciprocal %138 {approx = true} : vector<4x8x1xf32> -> vector<4x8x1xf32>
    %140 = vector.broadcast %139 : vector<4x8x1xf32> to vector<4x8x8xf32>
    %141 = arith.mulf %136, %140 : vector<4x8x8xf32>
    %142 = arith.truncf %141 : vector<4x8x8xf32> to vector<4x8x8xbf16>
    %c0_59 = arith.constant 0 : index
    %c0_60 = arith.constant 0 : index
    %c0_61 = arith.constant 0 : index
    %c0_62 = arith.constant 0 : index
    %143 = vector.load %arg23[%c0_59, %c0_60, %c0_61, %c0_62] : memref<1x4x8x8xbf16, #tpu.memory_space<vmem>>, vector<1x4x8x8xbf16>
    %144 = vector.shape_cast %143 : vector<1x4x8x8xbf16> to vector<4x8x8xbf16>
    %145 = vector.shape_cast %142 : vector<4x8x8xbf16> to vector<1x4x8x8xbf16>
    tpu.vector_store %arg23[%c0_59, %c0_60, %c0_61, %c0_62], %145 {strides = array<i32>} : memref<1x4x8x8xbf16, #tpu.memory_space<vmem>>, vector<1x4x8x8xbf16>,
    %146 = arith.truncf %141 : vector<4x8x8xf32> to vector<4x8x8xbf16>
    %147 = arith.truncf %122 : vector<4x8x8xf32> to vector<4x8x8xbf16>
    %cst_63 = arith.constant dense<0.000000e+00> : vector<4x8x8xf32>
    %148 = tpu.matmul %146, %147, %cst_63 {dimension_numbers = #tpu.dot_dimension_numbers<[2], [2], [1], [1], [0, 0, 0, 1, 1, 1], [0], [0]>} : vector<4x8x8xbf16>, vector<4x8x8xbf16>, vector<4x8x8xf32> -> vector<4x8x8xf32>
    %149 = arith.truncf %148 : vector<4x8x8xf32> to vector<4x8x8xbf16>
    %c0_64 = arith.constant 0 : index
    %c0_65 = arith.constant 0 : index
    %c0_66 = arith.constant 0 : index
    %150 = vector.load %arg13[%c0_64, %c0_65, %c0_66] : memref<4x8x32xbf16, #tpu.memory_space<vmem>>, vector<4x8x32xbf16>
    %cst_67 = arith.constant dense<0.000000e+00> : vector<4x8x32xf32>
    %151 = tpu.matmul %149, %150, %cst_67 {dimension_numbers = #tpu.dot_dimension_numbers<[2], [1], [1], [2], [0, 0, 0, 1, 1, 2], [0], [0]>} : vector<4x8x8xbf16>, vector<4x8x32xbf16>, vector<4x8x32xf32> -> vector<4x8x32xf32>
    %cst_68 = arith.constant dense<0.000000e+00> : vector<8x32xf32>
    %152 = vector.multi_reduction <add>, %151, %cst_68 [0] : vector<4x8x32xf32> to vector<8x32xf32>
    %c0_69 = arith.constant 0 : index
    %c0_70 = arith.constant 0 : index
    %153 = vector.load %arg14[%c0_69, %c0_70] : memref<1x32xf32, #tpu.memory_space<vmem>>, vector<1x32xf32>
    %154 = vector.broadcast %153 : vector<1x32xf32> to vector<8x32xf32>
    %155 = arith.addf %152, %154 : vector<8x32xf32>
    %156 = arith.addf %78, %155 : vector<8x32xf32>
    %cst_71 = arith.constant dense<0.000000e+00> : vector<8xf32>
    %157 = vector.multi_reduction <add>, %156, %cst_71 [1] : vector<8x32xf32> to vector<8xf32>
    %158 = vector.shape_cast %157 : vector<8xf32> to vector<8x1xf32>
    %cst_72 = arith.constant 3.200000e+01 : f32
    %159 = vector.broadcast %cst_72 : f32 to vector<8x1xf32>
    %160 = arith.divf %158, %159 : vector<8x1xf32>
    %161 = vector.broadcast %160 : vector<8x1xf32> to vector<8x32xf32>
    %162 = arith.subf %156, %161 : vector<8x32xf32>
    %163 = arith.mulf %162, %162 : vector<8x32xf32>
    %cst_73 = arith.constant dense<0.000000e+00> : vector<8xf32>
    %164 = vector.multi_reduction <add>, %163, %cst_73 [1] : vector<8x32xf32> to vector<8xf32>
    %165 = vector.shape_cast %164 : vector<8xf32> to vector<8x1xf32>
    %cst_74 = arith.constant 3.200000e+01 : f32
    %166 = vector.broadcast %cst_74 : f32 to vector<8x1xf32>
    %167 = arith.divf %165, %166 : vector<8x1xf32>
    %168 = vector.broadcast %160 : vector<8x1xf32> to vector<8x32xf32>
    %169 = arith.subf %156, %168 : vector<8x32xf32>
    %cst_75 = arith.constant 9.99999974E-6 : f32
    %170 = vector.broadcast %cst_75 : f32 to vector<8x1xf32>
    %171 = arith.addf %167, %170 : vector<8x1xf32>
    %172 = math.rsqrt %171 : vector<8x1xf32>
    %173 = vector.broadcast %172 : vector<8x1xf32> to vector<8x32xf32>
    %174 = arith.mulf %169, %173 : vector<8x32xf32>
    %175 = vector.extract_strided_slice %0 {offsets = [2, 0], sizes = [1, 32], strides = [1, 1]} : vector<4x32xf32> to vector<1x32xf32>
    %176 = vector.broadcast %175 : vector<1x32xf32> to vector<8x32xf32>
    %177 = arith.mulf %174, %176 : vector<8x32xf32>
    %178 = vector.extract_strided_slice %1 {offsets = [2, 0], sizes = [1, 32], strides = [1, 1]} : vector<4x32xf32> to vector<1x32xf32>
    %179 = vector.broadcast %178 : vector<1x32xf32> to vector<8x32xf32>
    %180 = arith.addf %177, %179 : vector<8x32xf32>
    %181 = arith.truncf %180 : vector<8x32xf32> to vector<8x32xbf16>
    %c0_76 = arith.constant 0 : index
    %c0_77 = arith.constant 0 : index
    %182 = vector.load %arg15[%c0_76, %c0_77] : memref<32x64xbf16, #tpu.memory_space<vmem>>, vector<32x64xbf16>
    %cst_78 = arith.constant dense<0.000000e+00> : vector<8x64xf32>
    %183 = tpu.matmul %181, %182, %cst_78 {dimension_numbers = #tpu.dot_dimension_numbers<[1], [0], [0], [1], [0, 0, 1, 1], [], []>} : vector<8x32xbf16>, vector<32x64xbf16>, vector<8x64xf32> -> vector<8x64xf32>
    %c0_79 = arith.constant 0 : index
    %c0_80 = arith.constant 0 : index
    %184 = vector.load %arg16[%c0_79, %c0_80] : memref<1x64xf32, #tpu.memory_space<vmem>>, vector<1x64xf32>
    %185 = vector.broadcast %184 : vector<1x64xf32> to vector<8x64xf32>
    %186 = arith.addf %183, %185 : vector<8x64xf32>
    %cst_81 = arith.constant 0.000000e+00 : f32
    %187 = vector.broadcast %cst_81 : f32 to vector<8x64xf32>
    %188 = arith.maximumf %186, %187 : vector<8x64xf32>
    %189 = arith.truncf %188 : vector<8x64xf32> to vector<8x64xbf16>
    %c0_82 = arith.constant 0 : index
    %c0_83 = arith.constant 0 : index
    %190 = vector.load %arg17[%c0_82, %c0_83] : memref<64x32xbf16, #tpu.memory_space<vmem>>, vector<64x32xbf16>
    %cst_84 = arith.constant dense<0.000000e+00> : vector<8x32xf32>
    %191 = tpu.matmul %189, %190, %cst_84 {dimension_numbers = #tpu.dot_dimension_numbers<[1], [0], [0], [1], [0, 0, 1, 1], [], []>} : vector<8x64xbf16>, vector<64x32xbf16>, vector<8x32xf32> -> vector<8x32xf32>
    %c0_85 = arith.constant 0 : index
    %c0_86 = arith.constant 0 : index
    %192 = vector.load %arg18[%c0_85, %c0_86] : memref<1x32xf32, #tpu.memory_space<vmem>>, vector<1x32xf32>
    %193 = vector.broadcast %192 : vector<1x32xf32> to vector<8x32xf32>
    %194 = arith.addf %191, %193 : vector<8x32xf32>
    %c0_87 = arith.constant 0 : index
    %c0_88 = arith.constant 0 : index
    %c0_89 = arith.constant 0 : index
    %195 = vector.load %arg24[%c0_87, %c0_88, %c0_89] : memref<1x8x32xf32, #tpu.memory_space<vmem>>, vector<1x8x32xf32>
    %196 = vector.shape_cast %195 : vector<1x8x32xf32> to vector<8x32xf32>
    %197 = vector.shape_cast %194 : vector<8x32xf32> to vector<1x8x32xf32>
    tpu.vector_store %arg24[%c0_87, %c0_88, %c0_89], %197 {strides = array<i32>} : memref<1x8x32xf32, #tpu.memory_space<vmem>>, vector<1x8x32xf32>,
    %198 = arith.addf %156, %194 : vector<8x32xf32>
    %cst_90 = arith.constant dense<0.000000e+00> : vector<8xf32>
    %199 = vector.multi_reduction <add>, %198, %cst_90 [1] : vector<8x32xf32> to vector<8xf32>
    %200 = vector.shape_cast %199 : vector<8xf32> to vector<8x1xf32>
    %cst_91 = arith.constant 3.200000e+01 : f32
    %201 = vector.broadcast %cst_91 : f32 to vector<8x1xf32>
    %202 = arith.divf %200, %201 : vector<8x1xf32>
    %203 = vector.broadcast %202 : vector<8x1xf32> to vector<8x32xf32>
    %204 = arith.subf %198, %203 : vector<8x32xf32>
    %205 = arith.mulf %204, %204 : vector<8x32xf32>
    %cst_92 = arith.constant dense<0.000000e+00> : vector<8xf32>
    %206 = vector.multi_reduction <add>, %205, %cst_92 [1] : vector<8x32xf32> to vector<8xf32>
    %207 = vector.shape_cast %206 : vector<8xf32> to vector<8x1xf32>
    %cst_93 = arith.constant 3.200000e+01 : f32
    %208 = vector.broadcast %cst_93 : f32 to vector<8x1xf32>
    %209 = arith.divf %207, %208 : vector<8x1xf32>
    %210 = vector.broadcast %202 : vector<8x1xf32> to vector<8x32xf32>
    %211 = arith.subf %198, %210 : vector<8x32xf32>
    %cst_94 = arith.constant 9.99999974E-6 : f32
    %212 = vector.broadcast %cst_94 : f32 to vector<8x1xf32>
    %213 = arith.addf %209, %212 : vector<8x1xf32>
    %214 = math.rsqrt %213 : vector<8x1xf32>
    %215 = vector.broadcast %214 : vector<8x1xf32> to vector<8x32xf32>
    %216 = arith.mulf %211, %215 : vector<8x32xf32>
    %217 = vector.extract_strided_slice %0 {offsets = [3, 0], sizes = [1, 32], strides = [1, 1]} : vector<4x32xf32> to vector<1x32xf32>
    %218 = vector.broadcast %217 : vector<1x32xf32> to vector<8x32xf32>
    %219 = arith.mulf %216, %218 : vector<8x32xf32>
    %220 = vector.extract_strided_slice %1 {offsets = [3, 0], sizes = [1, 32], strides = [1, 1]} : vector<4x32xf32> to vector<1x32xf32>
    %221 = vector.broadcast %220 : vector<1x32xf32> to vector<8x32xf32>
    %222 = arith.addf %219, %221 : vector<8x32xf32>
    %c0_95 = arith.constant 0 : index
    %c0_96 = arith.constant 0 : index
    %c0_97 = arith.constant 0 : index
    %223 = vector.load %arg21[%c0_95, %c0_96, %c0_97] : memref<1x8x32xf32, #tpu.memory_space<vmem>>, vector<1x8x32xf32>
    %224 = vector.shape_cast %223 : vector<1x8x32xf32> to vector<8x32xf32>
    %225 = vector.shape_cast %222 : vector<8x32xf32> to vector<1x8x32xf32>
    tpu.vector_store %arg21[%c0_95, %c0_96, %c0_97], %225 {strides = array<i32>} : memref<1x8x32xf32, #tpu.memory_space<vmem>>, vector<1x8x32xf32>,
    return
  }
  func.func @transform_0(%arg0: i32) -> (i32, i32, i32) {
    %c0_i32 = arith.constant 0 : i32
    %c0_i32_0 = arith.constant 0 : i32
    %c0_i32_1 = arith.constant 0 : i32
    return %arg0, %c0_i32, %c0_i32_0 : i32, i32, i32
  }
  func.func @transform_1(%arg0: i32) -> (i32, i32, i32) {
    %c0_i32 = arith.constant 0 : i32
    %c0_i32_0 = arith.constant 0 : i32
    %c0_i32_1 = arith.constant 0 : i32
    return %arg0, %c0_i32, %c0_i32_0 : i32, i32, i32
  }
  func.func @transform_2(%arg0: i32) -> (i32, i32, i32) {
    %c0_i32 = arith.constant 0 : i32
    %c0_i32_0 = arith.constant 0 : i32
    %c0_i32_1 = arith.constant 0 : i32
    return %arg0, %c0_i32, %c0_i32_0 : i32, i32, i32
  }
  func.func @transform_3(%arg0: i32) -> (i32, i32, i32) {
    %c0_i32 = arith.constant 0 : i32
    %c0_i32_0 = arith.constant 0 : i32
    %c0_i32_1 = arith.constant 0 : i32
    return %arg0, %c0_i32, %c0_i32_0 : i32, i32, i32
  }
  func.func @transform_4(%arg0: i32) -> (i32, i32) {
    %c0_i32 = arith.constant 0 : i32
    %c0_i32_0 = arith.constant 0 : i32
    %c0_i32_1 = arith.constant 0 : i32
    return %c0_i32, %c0_i32_0 : i32, i32
  }
  func.func @transform_5(%arg0: i32) -> (i32, i32) {
    %c0_i32 = arith.constant 0 : i32
    %c0_i32_0 = arith.constant 0 : i32
    %c0_i32_1 = arith.constant 0 : i32
    return %c0_i32, %c0_i32_0 : i32, i32
  }
  func.func @transform_6(%arg0: i32) -> (i32, i32, i32) {
    %c0_i32 = arith.constant 0 : i32
    %c0_i32_0 = arith.constant 0 : i32
    %c0_i32_1 = arith.constant 0 : i32
    %c0_i32_2 = arith.constant 0 : i32
    return %c0_i32, %c0_i32_0, %c0_i32_1 : i32, i32, i32
  }
  func.func @transform_7(%arg0: i32) -> (i32, i32) {
    %c0_i32 = arith.constant 0 : i32
    %c0_i32_0 = arith.constant 0 : i32
    %c0_i32_1 = arith.constant 0 : i32
    return %c0_i32, %c0_i32_0 : i32, i32
  }
  func.func @transform_8(%arg0: i32) -> (i32, i32) {
    %c0_i32 = arith.constant 0 : i32
    %c0_i32_0 = arith.constant 0 : i32
    %c0_i32_1 = arith.constant 0 : i32
    return %c0_i32, %c0_i32_0 : i32, i32
  }
  func.func @transform_9(%arg0: i32) -> (i32, i32) {
    %c0_i32 = arith.constant 0 : i32
    %c0_i32_0 = arith.constant 0 : i32
    %c0_i32_1 = arith.constant 0 : i32
    return %c0_i32, %c0_i32_0 : i32, i32
  }
  func.func @transform_10(%arg0: i32) -> (i32, i32) {
    %c0_i32 = arith.constant 0 : i32
    %c0_i32_0 = arith.constant 0 : i32
    %c0_i32_1 = arith.constant 0 : i32
    return %c0_i32, %c0_i32_0 : i32, i32
  }
  func.func @transform_11(%arg0: i32) -> (i32, i32) {
    %c0_i32 = arith.constant 0 : i32
    %c0_i32_0 = arith.constant 0 : i32
    %c0_i32_1 = arith.constant 0 : i32
    return %c0_i32, %c0_i32_0 : i32, i32
  }
  func.func @transform_12(%arg0: i32) -> (i32, i32, i32) {
    %c0_i32 = arith.constant 0 : i32
    %c0_i32_0 = arith.constant 0 : i32
    %c0_i32_1 = arith.constant 0 : i32
    %c0_i32_2 = arith.constant 0 : i32
    return %c0_i32, %c0_i32_0, %c0_i32_1 : i32, i32, i32
  }
  func.func @transform_13(%arg0: i32) -> (i32, i32) {
    %c0_i32 = arith.constant 0 : i32
    %c0_i32_0 = arith.constant 0 : i32
    %c0_i32_1 = arith.constant 0 : i32
    return %c0_i32, %c0_i32_0 : i32, i32
  }
  func.func @transform_14(%arg0: i32) -> (i32, i32) {
    %c0_i32 = arith.constant 0 : i32
    %c0_i32_0 = arith.constant 0 : i32
    %c0_i32_1 = arith.constant 0 : i32
    return %c0_i32, %c0_i32_0 : i32, i32
  }
  func.func @transform_15(%arg0: i32) -> (i32, i32) {
    %c0_i32 = arith.constant 0 : i32
    %c0_i32_0 = arith.constant 0 : i32
    %c0_i32_1 = arith.constant 0 : i32
    return %c0_i32, %c0_i32_0 : i32, i32
  }
  func.func @transform_16(%arg0: i32) -> (i32, i32) {
    %c0_i32 = arith.constant 0 : i32
    %c0_i32_0 = arith.constant 0 : i32
    %c0_i32_1 = arith.constant 0 : i32
    return %c0_i32, %c0_i32_0 : i32, i32
  }
  func.func @transform_17(%arg0: i32) -> (i32, i32) {
    %c0_i32 = arith.constant 0 : i32
    %c0_i32_0 = arith.constant 0 : i32
    %c0_i32_1 = arith.constant 0 : i32
    return %c0_i32, %c0_i32_0 : i32, i32
  }
  func.func @transform_18(%arg0: i32) -> (i32, i32) {
    %c0_i32 = arith.constant 0 : i32
    %c0_i32_0 = arith.constant 0 : i32
    %c0_i32_1 = arith.constant 0 : i32
    return %c0_i32, %c0_i32_0 : i32, i32
  }
  func.func @transform_19(%arg0: i32) -> (i32, i32) {
    %c0_i32 = arith.constant 0 : i32
    %c0_i32_0 = arith.constant 0 : i32
    %c0_i32_1 = arith.constant 0 : i32
    return %c0_i32, %c0_i32_0 : i32, i32
  }
  func.func @transform_20(%arg0: i32) -> (i32, i32, i32) {
    %c0_i32 = arith.constant 0 : i32
    %c0_i32_0 = arith.constant 0 : i32
    %c0_i32_1 = arith.constant 0 : i32
    return %arg0, %c0_i32, %c0_i32_0 : i32, i32, i32
  }
  func.func @transform_21(%arg0: i32) -> (i32, i32, i32, i32) {
    %c0_i32 = arith.constant 0 : i32
    %c0_i32_0 = arith.constant 0 : i32
    %c0_i32_1 = arith.constant 0 : i32
    %c0_i32_2 = arith.constant 0 : i32
    return %arg0, %c0_i32, %c0_i32_0, %c0_i32_1 : i32, i32, i32, i32
  }
  func.func @transform_22(%arg0: i32) -> (i32, i32, i32, i32) {
    %c0_i32 = arith.constant 0 : i32
    %c0_i32_0 = arith.constant 0 : i32
    %c0_i32_1 = arith.constant 0 : i32
    %c0_i32_2 = arith.constant 0 : i32
    return %arg0, %c0_i32, %c0_i32_0, %c0_i32_1 : i32, i32, i32, i32
  }
  func.func @transform_23(%arg0: i32) -> (i32, i32, i32) {
    %c0_i32 = arith.constant 0 : i32
    %c0_i32_0 = arith.constant 0 : i32
    %c0_i32_1 = arith.constant 0 : i32
    return %arg0, %c0_i32, %c0_i32_0 : i32, i32, i32
  }
}

</mosaic_0001>

<llo_original>
// kernel: tpu_custom_call.1
$region0: #{tpu_custom_call.1}
  #allocation0 [shape = 'u32[]', space=smem, size = 0x4, offset = 0x4, fixed_abs, tag = 'smem constant byte address 0x4 - core index']
  #allocation1 [shape = 'u32[72,128]{1,0:T(1,128)}', space=vmem, size = 0x9000, scoped, tag = 'internal scratch']
  %s0 = inlined_call_operand.vmem [shape: f32[2,8,32], index: 0, kind: input, shape index: {}]
  %s1 = inlined_call_operand.vmem [shape: f32[2,8,32], index: 1, kind: input, shape index: {}]
  %s2 = inlined_call_operand.vmem [shape: bf16[2,8,8], index: 2, kind: input, shape index: {}]
  %s3 = inlined_call_operand.vmem [shape: bf16[2,8,8], index: 3, kind: input, shape index: {}]
  %s4 = inlined_call_operand.vmem [shape: bf16[96,32], index: 4, kind: input, shape index: {}]
  %s5 = inlined_call_operand.vmem [shape: f32[96,1], index: 5, kind: input, shape index: {}]
  %s6 = inlined_call_operand.vmem [shape: bf16[4,8,32], index: 6, kind: input, shape index: {}]
  %s7 = inlined_call_operand.vmem [shape: f32[1,32], index: 7, kind: input, shape index: {}]
  %s8 = inlined_call_operand.vmem [shape: bf16[32,32], index: 8, kind: input, shape index: {}]
  %s9 = inlined_call_operand.vmem [shape: f32[32,1], index: 9, kind: input, shape index: {}]
  %s10 = inlined_call_operand.vmem [shape: bf16[64,32], index: 10, kind: input, shape index: {}]
  %s11 = inlined_call_operand.vmem [shape: f32[64,1], index: 11, kind: input, shape index: {}]
  %s12 = inlined_call_operand.vmem [shape: bf16[4,8,32], index: 12, kind: input, shape index: {}]
  %s13 = inlined_call_operand.vmem [shape: f32[1,32], index: 13, kind: input, shape index: {}]
  %s14 = inlined_call_operand.vmem [shape: bf16[32,64], index: 14, kind: input, shape index: {}]
  %s15 = inlined_call_operand.vmem [shape: f32[1,64], index: 15, kind: input, shape index: {}]
  %s16 = inlined_call_operand.vmem [shape: bf16[64,32], index: 16, kind: input, shape index: {}]
  %s17 = inlined_call_operand.vmem [shape: f32[1,32], index: 17, kind: input, shape index: {}]
  %s18 = inlined_call_operand.vmem [shape: f32[4,32], index: 18, kind: input, shape index: {}]
  %s19 = inlined_call_operand.vmem [shape: f32[4,32], index: 19, kind: input, shape index: {}]
  %s20 = inlined_call_operand.hbm [shape: f32[2,8,32], index: 20, kind: output, shape index: {0}]
  %s21 = inlined_call_operand.hbm [shape: bf16[2,4,8,8], index: 21, kind: output, shape index: {1}]
  %s22 = inlined_call_operand.hbm [shape: bf16[2,4,8,8], index: 22, kind: output, shape index: {2}]
  %s23 = inlined_call_operand.hbm [shape: f32[2,8,32], index: 23, kind: output, shape index: {3}]
  %24 = xla_tuple %s20, %s21, %s22, %s23
  %s25 = sld [smem:[#allocation0]]
  $region137: #{tpu_custom_call.1} parent=0
    _
  %s27 = ssub.s32 1, %s25
  %s28 = scalar_select 0, %s27, %s25
  $region1: #{tpu_custom_call.1} parent=0
    #allocation2 [shape = 'u8[8192]{0}', space=vmem, size = 0x2000, scoped, tag = 'output window, operand 0']
    #allocation3 [shape = 's32[2]{0}', space=sflag, size = 0x8, scoped, tag = 'scoped memory for tpu_custom_call.1']
    #allocation4 [shape = 'u8[16384]{0}', space=vmem, size = 0x4000, scoped, tag = 'output window, operand 1']
    #allocation5 [shape = 's32[2]{0}', space=sflag, size = 0x8, scoped, tag = 'scoped memory for tpu_custom_call.1']
    #allocation6 [shape = 'u8[16384]{0}', space=vmem, size = 0x4000, scoped, tag = 'output window, operand 2']
    #allocation7 [shape = 'u8[8192]{0}', space=vmem, size = 0x2000, scoped, tag = 'output window, operand 3']
    #allocation8 [shape = 's32[2]{0}', space=sflag, size = 0x8, scoped, tag = 'scoped memory for tpu_custom_call.1']
    %29 = vsyncpa [#allocation3], 0
    %s30 = scalar_lea.sflag [#allocation3], 1
    %31 = vsyncpa %s30, 0
    %32 = vsyncpa [#allocation5], 0
    %s33 = scalar_lea.sflag [#allocation5], 1
    %34 = vsyncpa %s33, 0
    %35 = vsyncpa [#allocation8], 0
    %s36 = scalar_lea.sflag [#allocation8], 1
    %37 = vsyncpa %s36, 0
    loop: start=0, step=1, limit=4
    $region2: #{tpu_custom_call.1} parent=1 // loop_pre_header
      _
    $region3: #{tpu_custom_call.1} parent=1 // loop_header
      %s39 = sphi 0, %s43
      %p40 = scmp.ge.s32.totalorder %s39, 4
      %s49 = sphi 0, %s51
      %s52 = sphi 0, %s49
      %s53 = sphi 0, %s52
      %s69 = sphi 0, %s53
      %s75 = sphi 0, %s77
      %s78 = sphi 0, %s75
      %s79 = sphi 0, %s78
      %s95 = sphi 0, %s79
      %s101 = sphi 0, %s103
      %s104 = sphi 0, %s101
      %s105 = sphi 0, %s104
      %s121 = sphi 0, %s105
      %s127 = sphi 0, %s129
      %s130 = sphi 0, %s127
      %s131 = sphi 0, %s130
      %s147 = sphi 0, %s131
      %s151 = sphi 0, %s151
      %s153 = sphi 0, %s151
      %s154 = sphi 0, %s153
      %s168 = sphi 0, %s154
      %s172 = sphi 0, %s172
      %s174 = sphi 0, %s172
      %s175 = sphi 0, %s174
      %s189 = sphi 0, %s175
      %s193 = sphi 0, %s193
      %s195 = sphi 0, %s193
      %s196 = sphi 0, %s195
      %s210 = sphi 0, %s196
      %s214 = sphi 0, %s214
      %s216 = sphi 0, %s214
      %s217 = sphi 0, %s216
      %s231 = sphi 0, %s217
      %s235 = sphi 0, %s235
      %s237 = sphi 0, %s235
      %s238 = sphi 0, %s237
      %s252 = sphi 0, %s238
      %s256 = sphi 0, %s256
      %s258 = sphi 0, %s256
      %s259 = sphi 0, %s258
      %s273 = sphi 0, %s259
      %s277 = sphi 0, %s277
      %s279 = sphi 0, %s277
      %s280 = sphi 0, %s279
      %s294 = sphi 0, %s280
      %s298 = sphi 0, %s298
      %s300 = sphi 0, %s298
      %s301 = sphi 0, %s300
      %s315 = sphi 0, %s301
      %s319 = sphi 0, %s319
      %s321 = sphi 0, %s319
      %s322 = sphi 0, %s321
      %s336 = sphi 0, %s322
      %s340 = sphi 0, %s340
      %s342 = sphi 0, %s340
      %s343 = sphi 0, %s342
      %s357 = sphi 0, %s343
      %s361 = sphi 0, %s361
      %s363 = sphi 0, %s361
      %s364 = sphi 0, %s363
      %s378 = sphi 0, %s364
      %s382 = sphi 0, %s382
      %s384 = sphi 0, %s382
      %s385 = sphi 0, %s384
      %s399 = sphi 0, %s385
      %s403 = sphi 0, %s403
      %s405 = sphi 0, %s403
      %s406 = sphi 0, %s405
      %s420 = sphi 0, %s406
      %s424 = sphi 0, %s424
      %s426 = sphi 0, %s424
      %s427 = sphi 0, %s426
      %s441 = sphi 0, %s427
      %s445 = sphi 0, %s445
      %s447 = sphi 0, %s445
      %s448 = sphi 0, %s447
      %s462 = sphi 0, %s448
      %s466 = sphi 0, %s466
      %s468 = sphi 0, %s466
      %s469 = sphi 0, %s468
      %s483 = sphi 0, %s469
      %s489 = sphi 0, %s491
      %s492 = sphi 0, %s489
      %s493 = sphi 0, %s492
      %s509 = sphi 0, %s493
      %s515 = sphi 0, %s517
      %s518 = sphi 0, %s515
      %s519 = sphi 0, %s518
      %s535 = sphi 0, %s519
      %s541 = sphi 0, %s543
      %s544 = sphi 0, %s541
      %s545 = sphi 0, %s544
      %s561 = sphi 0, %s545
      %s567 = sphi 0, %s569
      %s570 = sphi 0, %s567
      %s571 = sphi 0, %s570
      %s587 = sphi 0, %s571
    $region4: #{tpu_custom_call.1} parent=1 // loop_header_branch
      %42 = sbr.rel (%p40) target = $region8
    $region5: #{tpu_custom_call.1} parent=1 // loop_body
      %s44 = ssub.s32 %s39, 1
      %s45 = ssub.s32 %s39, 2
      %s46 = sadd.s32 %s39, 1
      %s47 = ssub.s32 %s39, %s46
      %p48 = scmp.eq.s32.totalorder %s47, 0
      %s50 = sadd.s32 %s49, 1
      %s51 = scalar_select %p48, %s49, %s50
      %p54 = pneg %p48
      %p55 = scmp.eq.s32.totalorder %s39, 1
      %p56 = por %p54, %p55
      %p57 = scmp.ne.s32.totalorder %s49, %s52
      %p58 = scmp.eq.s32.totalorder %s39, 0
      %p59 = por %p57, %p58
      %p60 = scmp.ne.s32.totalorder %s49, %s52
      %p61 = scmp.eq.s32.totalorder %s44, 1
      %p62 = por %p60, %p61
      %p63 = scmp.ne.s32.totalorder %s52, %s53
      %p64 = scmp.eq.s32.totalorder %s44, 0
      %p65 = por %p63, %p64
      %p66 = scmp.ne.s32.totalorder %s52, %s53
      %p67 = scmp.eq.s32.totalorder %s45, 1
      %p68 = por %p66, %p67
      %p70 = scmp.ne.s32.totalorder %s53, %s69
      %p71 = scmp.eq.s32.totalorder %s45, 0
      %p72 = por %p70, %p71
      %s73 = ssub.s32 %s39, %s46
      %p74 = scmp.eq.s32.totalorder %s73, 0
      %s76 = sadd.s32 %s75, 1
      %s77 = scalar_select %p74, %s75, %s76
      %p80 = pneg %p74
      %p81 = scmp.eq.s32.totalorder %s39, 1
      %p82 = por %p80, %p81
      %p83 = scmp.ne.s32.totalorder %s75, %s78
      %p84 = scmp.eq.s32.totalorder %s39, 0
      %p85 = por %p83, %p84
      %p86 = scmp.ne.s32.totalorder %s75, %s78
      %p87 = scmp.eq.s32.totalorder %s44, 1
      %p88 = por %p86, %p87
      %p89 = scmp.ne.s32.totalorder %s78, %s79
      %p90 = scmp.eq.s32.totalorder %s44, 0
      %p91 = por %p89, %p90
      %p92 = scmp.ne.s32.totalorder %s78, %s79
      %p93 = scmp.eq.s32.totalorder %s45, 1
      %p94 = por %p92, %p93
      %p96 = scmp.ne.s32.totalorder %s79, %s95
      %p97 = scmp.eq.s32.totalorder %s45, 0
      %p98 = por %p96, %p97
      %s99 = ssub.s32 %s39, %s46
      %p100 = scmp.eq.s32.totalorder %s99, 0
      %s102 = sadd.s32 %s101, 1
      %s103 = scalar_select %p100, %s101, %s102
      %p106 = pneg %p100
      %p107 = scmp.eq.s32.totalorder %s39, 1
      %p108 = por %p106, %p107
      %p109 = scmp.ne.s32.totalorder %s101, %s104
      %p110 = scmp.eq.s32.totalorder %s39, 0
      %p111 = por %p109, %p110
      %p112 = scmp.ne.s32.totalorder %s101, %s104
      %p113 = scmp.eq.s32.totalorder %s44, 1
      %p114 = por %p112, %p113
      %p115 = scmp.ne.s32.totalorder %s104, %s105
      %p116 = scmp.eq.s32.totalorder %s44, 0
      %p117 = por %p115, %p116
      %p118 = scmp.ne.s32.totalorder %s104, %s105
      %p119 = scmp.eq.s32.totalorder %s45, 1
      %p120 = por %p118, %p119
      %p122 = scmp.ne.s32.totalorder %s105, %s121
      %p123 = scmp.eq.s32.totalorder %s45, 0
      %p124 = por %p122, %p123
      %s125 = ssub.s32 %s39, %s46
      %p126 = scmp.eq.s32.totalorder %s125, 0
      %s128 = sadd.s32 %s127, 1
      %s129 = scalar_select %p126, %s127, %s128
      %p132 = pneg %p126
      %p133 = scmp.eq.s32.totalorder %s39, 1
      %p134 = por %p132, %p133
      %p135 = scmp.ne.s32.totalorder %s127, %s130
      %p136 = scmp.eq.s32.totalorder %s39, 0
      %p137 = por %p135, %p136
      %p138 = scmp.ne.s32.totalorder %s127, %s130
      %p139 = scmp.eq.s32.totalorder %s44, 1
      %p140 = por %p138, %p139
      %p141 = scmp.ne.s32.totalorder %s130, %s131
      %p142 = scmp.eq.s32.totalorder %s44, 0
      %p143 = por %p141, %p142
      %p144 = scmp.ne.s32.totalorder %s130, %s131
      %p145 = scmp.eq.s32.totalorder %s45, 1
      %p146 = por %p144, %p145
      %p148 = scmp.ne.s32.totalorder %s131, %s147
      %p149 = scmp.eq.s32.totalorder %s45, 0
      %p150 = por %p148, %p149
      %s152 = sadd.s32 %s151, 1
      %p155 = scmp.eq.s32.totalorder %s39, 1
      %p156 = scmp.ne.s32.totalorder %s151, %s153
      %p157 = scmp.eq.s32.totalorder %s39, 0
      %p158 = por %p156, %p157
      %p159 = scmp.ne.s32.totalorder %s151, %s153
      %p160 = scmp.eq.s32.totalorder %s44, 1
      %p161 = por %p159, %p160
      %p162 = scmp.ne.s32.totalorder %s153, %s154
      %p163 = scmp.eq.s32.totalorder %s44, 0
      %p164 = por %p162, %p163
      %p165 = scmp.ne.s32.totalorder %s153, %s154
      %p166 = scmp.eq.s32.totalorder %s45, 1
      %p167 = por %p165, %p166
      %p169 = scmp.ne.s32.totalorder %s154, %s168
      %p170 = scmp.eq.s32.totalorder %s45, 0
      %p171 = por %p169, %p170
      %s173 = sadd.s32 %s172, 1
      %p176 = scmp.eq.s32.totalorder %s39, 1
      %p177 = scmp.ne.s32.totalorder %s172, %s174
      %p178 = scmp.eq.s32.totalorder %s39, 0
      %p179 = por %p177, %p178
      %p180 = scmp.ne.s32.totalorder %s172, %s174
      %p181 = scmp.eq.s32.totalorder %s44, 1
      %p182 = por %p180, %p181
      %p183 = scmp.ne.s32.totalorder %s174, %s175
      %p184 = scmp.eq.s32.totalorder %s44, 0
      %p185 = por %p183, %p184
      %p186 = scmp.ne.s32.totalorder %s174, %s175
      %p187 = scmp.eq.s32.totalorder %s45, 1
      %p188 = por %p186, %p187
      %p190 = scmp.ne.s32.totalorder %s175, %s189
      %p191 = scmp.eq.s32.totalorder %s45, 0
      %p192 = por %p190, %p191
      %s194 = sadd.s32 %s193, 1
      %p197 = scmp.eq.s32.totalorder %s39, 1
      %p198 = scmp.ne.s32.totalorder %s193, %s195
      %p199 = scmp.eq.s32.totalorder %s39, 0
      %p200 = por %p198, %p199
      %p201 = scmp.ne.s32.totalorder %s193, %s195
      %p202 = scmp.eq.s32.totalorder %s44, 1
      %p203 = por %p201, %p202
      %p204 = scmp.ne.s32.totalorder %s195, %s196
      %p205 = scmp.eq.s32.totalorder %s44, 0
      %p206 = por %p204, %p205
      %p207 = scmp.ne.s32.totalorder %s195, %s196
      %p208 = scmp.eq.s32.totalorder %s45, 1
      %p209 = por %p207, %p208
      %p211 = scmp.ne.s32.totalorder %s196, %s210
      %p212 = scmp.eq.s32.totalorder %s45, 0
      %p213 = por %p211, %p212
      %s215 = sadd.s32 %s214, 1
      %p218 = scmp.eq.s32.totalorder %s39, 1
      %p219 = scmp.ne.s32.totalorder %s214, %s216
      %p220 = scmp.eq.s32.totalorder %s39, 0
      %p221 = por %p219, %p220
      %p222 = scmp.ne.s32.totalorder %s214, %s216
      %p223 = scmp.eq.s32.totalorder %s44, 1
      %p224 = por %p222, %p223
      %p225 = scmp.ne.s32.totalorder %s216, %s217
      %p226 = scmp.eq.s32.totalorder %s44, 0
      %p227 = por %p225, %p226
      %p228 = scmp.ne.s32.totalorder %s216, %s217
      %p229 = scmp.eq.s32.totalorder %s45, 1
      %p230 = por %p228, %p229
      %p232 = scmp.ne.s32.totalorder %s217, %s231
      %p233 = scmp.eq.s32.totalorder %s45, 0
      %p234 = por %p232, %p233
      %s236 = sadd.s32 %s235, 1
      %p239 = scmp.eq.s32.totalorder %s39, 1
      %p240 = scmp.ne.s32.totalorder %s235, %s237
      %p241 = scmp.eq.s32.totalorder %s39, 0
      %p242 = por %p240, %p241
      %p243 = scmp.ne.s32.totalorder %s235, %s237
      %p244 = scmp.eq.s32.totalorder %s44, 1
      %p245 = por %p243, %p244
      %p246 = scmp.ne.s32.totalorder %s237, %s238
      %p247 = scmp.eq.s32.totalorder %s44, 0
      %p248 = por %p246, %p247
      %p249 = scmp.ne.s32.totalorder %s237, %s238
      %p250 = scmp.eq.s32.totalorder %s45, 1
      %p251 = por %p249, %p250
      %p253 = scmp.ne.s32.totalorder %s238, %s252
      %p254 = scmp.eq.s32.totalorder %s45, 0
      %p255 = por %p253, %p254
      %s257 = sadd.s32 %s256, 1
      %p260 = scmp.eq.s32.totalorder %s39, 1
      %p261 = scmp.ne.s32.totalorder %s256, %s258
      %p262 = scmp.eq.s32.totalorder %s39, 0
      %p263 = por %p261, %p262
      %p264 = scmp.ne.s32.totalorder %s256, %s258
      %p265 = scmp.eq.s32.totalorder %s44, 1
      %p266 = por %p264, %p265
      %p267 = scmp.ne.s32.totalorder %s258, %s259
      %p268 = scmp.eq.s32.totalorder %s44, 0
      %p269 = por %p267, %p268
      %p270 = scmp.ne.s32.totalorder %s258, %s259
      %p271 = scmp.eq.s32.totalorder %s45, 1
      %p272 = por %p270, %p271
      %p274 = scmp.ne.s32.totalorder %s259, %s273
      %p275 = scmp.eq.s32.totalorder %s45, 0
      %p276 = por %p274, %p275
      %s278 = sadd.s32 %s277, 1
      %p281 = scmp.eq.s32.totalorder %s39, 1
      %p282 = scmp.ne.s32.totalorder %s277, %s279
      %p283 = scmp.eq.s32.totalorder %s39, 0
      %p284 = por %p282, %p283
      %p285 = scmp.ne.s32.totalorder %s277, %s279
      %p286 = scmp.eq.s32.totalorder %s44, 1
      %p287 = por %p285, %p286
      %p288 = scmp.ne.s32.totalorder %s279, %s280
      %p289 = scmp.eq.s32.totalorder %s44, 0
      %p290 = por %p288, %p289
      %p291 = scmp.ne.s32.totalorder %s279, %s280
      %p292 = scmp.eq.s32.totalorder %s45, 1
      %p293 = por %p291, %p292
      %p295 = scmp.ne.s32.totalorder %s280, %s294
      %p296 = scmp.eq.s32.totalorder %s45, 0
      %p297 = por %p295, %p296
      %s299 = sadd.s32 %s298, 1
      %p302 = scmp.eq.s32.totalorder %s39, 1
      %p303 = scmp.ne.s32.totalorder %s298, %s300
      %p304 = scmp.eq.s32.totalorder %s39, 0
      %p305 = por %p303, %p304
      %p306 = scmp.ne.s32.totalorder %s298, %s300
      %p307 = scmp.eq.s32.totalorder %s44, 1
      %p308 = por %p306, %p307
      %p309 = scmp.ne.s32.totalorder %s300, %s301
      %p310 = scmp.eq.s32.totalorder %s44, 0
      %p311 = por %p309, %p310
      %p312 = scmp.ne.s32.totalorder %s300, %s301
      %p313 = scmp.eq.s32.totalorder %s45, 1
      %p314 = por %p312, %p313
      %p316 = scmp.ne.s32.totalorder %s301, %s315
      %p317 = scmp.eq.s32.totalorder %s45, 0
      %p318 = por %p316, %p317
      %s320 = sadd.s32 %s319, 1
      %p323 = scmp.eq.s32.totalorder %s39, 1
      %p324 = scmp.ne.s32.totalorder %s319, %s321
      %p325 = scmp.eq.s32.totalorder %s39, 0
      %p326 = por %p324, %p325
      %p327 = scmp.ne.s32.totalorder %s319, %s321
      %p328 = scmp.eq.s32.totalorder %s44, 1
      %p329 = por %p327, %p328
      %p330 = scmp.ne.s32.totalorder %s321, %s322
      %p331 = scmp.eq.s32.totalorder %s44, 0
      %p332 = por %p330, %p331
      %p333 = scmp.ne.s32.totalorder %s321, %s322
      %p334 = scmp.eq.s32.totalorder %s45, 1
      %p335 = por %p333, %p334
      %p337 = scmp.ne.s32.totalorder %s322, %s336
      %p338 = scmp.eq.s32.totalorder %s45, 0
      %p339 = por %p337, %p338
      %s341 = sadd.s32 %s340, 1
      %p344 = scmp.eq.s32.totalorder %s39, 1
      %p345 = scmp.ne.s32.totalorder %s340, %s342
      %p346 = scmp.eq.s32.totalorder %s39, 0
      %p347 = por %p345, %p346
      %p348 = scmp.ne.s32.totalorder %s340, %s342
      %p349 = scmp.eq.s32.totalorder %s44, 1
      %p350 = por %p348, %p349
      %p351 = scmp.ne.s32.totalorder %s342, %s343
      %p352 = scmp.eq.s32.totalorder %s44, 0
      %p353 = por %p351, %p352
      %p354 = scmp.ne.s32.totalorder %s342, %s343
      %p355 = scmp.eq.s32.totalorder %s45, 1
      %p356 = por %p354, %p355
      %p358 = scmp.ne.s32.totalorder %s343, %s357
      %p359 = scmp.eq.s32.totalorder %s45, 0
      %p360 = por %p358, %p359
      %s362 = sadd.s32 %s361, 1
      %p365 = scmp.eq.s32.totalorder %s39, 1
      %p366 = scmp.ne.s32.totalorder %s361, %s363
      %p367 = scmp.eq.s32.totalorder %s39, 0
      %p368 = por %p366, %p367
      %p369 = scmp.ne.s32.totalorder %s361, %s363
      %p370 = scmp.eq.s32.totalorder %s44, 1
      %p371 = por %p369, %p370
      %p372 = scmp.ne.s32.totalorder %s363, %s364
      %p373 = scmp.eq.s32.totalorder %s44, 0
      %p374 = por %p372, %p373
      %p375 = scmp.ne.s32.totalorder %s363, %s364
      %p376 = scmp.eq.s32.totalorder %s45, 1
      %p377 = por %p375, %p376
      %p379 = scmp.ne.s32.totalorder %s364, %s378
      %p380 = scmp.eq.s32.totalorder %s45, 0
      %p381 = por %p379, %p380
      %s383 = sadd.s32 %s382, 1
      %p386 = scmp.eq.s32.totalorder %s39, 1
      %p387 = scmp.ne.s32.totalorder %s382, %s384
      %p388 = scmp.eq.s32.totalorder %s39, 0
      %p389 = por %p387, %p388
      %p390 = scmp.ne.s32.totalorder %s382, %s384
      %p391 = scmp.eq.s32.totalorder %s44, 1
      %p392 = por %p390, %p391
      %p393 = scmp.ne.s32.totalorder %s384, %s385
      %p394 = scmp.eq.s32.totalorder %s44, 0
      %p395 = por %p393, %p394
      %p396 = scmp.ne.s32.totalorder %s384, %s385
      %p397 = scmp.eq.s32.totalorder %s45, 1
      %p398 = por %p396, %p397
      %p400 = scmp.ne.s32.totalorder %s385, %s399
      %p401 = scmp.eq.s32.totalorder %s45, 0
      %p402 = por %p400, %p401
      %s404 = sadd.s32 %s403, 1
      %p407 = scmp.eq.s32.totalorder %s39, 1
      %p408 = scmp.ne.s32.totalorder %s403, %s405
      %p409 = scmp.eq.s32.totalorder %s39, 0
      %p410 = por %p408, %p409
      %p411 = scmp.ne.s32.totalorder %s403, %s405
      %p412 = scmp.eq.s32.totalorder %s44, 1
      %p413 = por %p411, %p412
      %p414 = scmp.ne.s32.totalorder %s405, %s406
      %p415 = scmp.eq.s32.totalorder %s44, 0
      %p416 = por %p414, %p415
      %p417 = scmp.ne.s32.totalorder %s405, %s406
      %p418 = scmp.eq.s32.totalorder %s45, 1
      %p419 = por %p417, %p418
      %p421 = scmp.ne.s32.totalorder %s406, %s420
      %p422 = scmp.eq.s32.totalorder %s45, 0
      %p423 = por %p421, %p422
      %s425 = sadd.s32 %s424, 1
      %p428 = scmp.eq.s32.totalorder %s39, 1
      %p429 = scmp.ne.s32.totalorder %s424, %s426
      %p430 = scmp.eq.s32.totalorder %s39, 0
      %p431 = por %p429, %p430
      %p432 = scmp.ne.s32.totalorder %s424, %s426
      %p433 = scmp.eq.s32.totalorder %s44, 1
      %p434 = por %p432, %p433
      %p435 = scmp.ne.s32.totalorder %s426, %s427
      %p436 = scmp.eq.s32.totalorder %s44, 0
      %p437 = por %p435, %p436
      %p438 = scmp.ne.s32.totalorder %s426, %s427
      %p439 = scmp.eq.s32.totalorder %s45, 1
      %p440 = por %p438, %p439
      %p442 = scmp.ne.s32.totalorder %s427, %s441
      %p443 = scmp.eq.s32.totalorder %s45, 0
      %p444 = por %p442, %p443
      %s446 = sadd.s32 %s445, 1
      %p449 = scmp.eq.s32.totalorder %s39, 1
      %p450 = scmp.ne.s32.totalorder %s445, %s447
      %p451 = scmp.eq.s32.totalorder %s39, 0
      %p452 = por %p450, %p451
      %p453 = scmp.ne.s32.totalorder %s445, %s447
      %p454 = scmp.eq.s32.totalorder %s44, 1
      %p455 = por %p453, %p454
      %p456 = scmp.ne.s32.totalorder %s447, %s448
      %p457 = scmp.eq.s32.totalorder %s44, 0
      %p458 = por %p456, %p457
      %p459 = scmp.ne.s32.totalorder %s447, %s448
      %p460 = scmp.eq.s32.totalorder %s45, 1
      %p461 = por %p459, %p460
      %p463 = scmp.ne.s32.totalorder %s448, %s462
      %p464 = scmp.eq.s32.totalorder %s45, 0
      %p465 = por %p463, %p464
      %s467 = sadd.s32 %s466, 1
      %p470 = scmp.eq.s32.totalorder %s39, 1
      %p471 = scmp.ne.s32.totalorder %s466, %s468
      %p472 = scmp.eq.s32.totalorder %s39, 0
      %p473 = por %p471, %p472
      %p474 = scmp.ne.s32.totalorder %s466, %s468
      %p475 = scmp.eq.s32.totalorder %s44, 1
      %p476 = por %p474, %p475
      %p477 = scmp.ne.s32.totalorder %s468, %s469
      %p478 = scmp.eq.s32.totalorder %s44, 0
      %p479 = por %p477, %p478
      %p480 = scmp.ne.s32.totalorder %s468, %s469
      %p481 = scmp.eq.s32.totalorder %s45, 1
      %p482 = por %p480, %p481
      %p484 = scmp.ne.s32.totalorder %s469, %s483
      %p485 = scmp.eq.s32.totalorder %s45, 0
      %p486 = por %p484, %p485
      %s487 = ssub.s32 %s39, %s46
      %p488 = scmp.eq.s32.totalorder %s487, 0
      %s490 = sadd.s32 %s489, 1
      %s491 = scalar_select %p488, %s489, %s490
      %p494 = pneg %p488
      %p495 = scmp.eq.s32.totalorder %s39, 1
      %p496 = por %p494, %p495
      %p497 = scmp.ne.s32.totalorder %s489, %s492
      %p498 = scmp.eq.s32.totalorder %s39, 0
      %p499 = por %p497, %p498
      %p500 = scmp.ne.s32.totalorder %s489, %s492
      %p501 = scmp.eq.s32.totalorder %s44, 1
      %p502 = por %p500, %p501
      %p503 = scmp.ne.s32.totalorder %s492, %s493
      %p504 = scmp.eq.s32.totalorder %s44, 0
      %p505 = por %p503, %p504
      %p506 = scmp.ne.s32.totalorder %s492, %s493
      %p507 = scmp.eq.s32.totalorder %s45, 1
      %p508 = por %p506, %p507
      %p510 = scmp.ne.s32.totalorder %s493, %s509
      %p511 = scmp.eq.s32.totalorder %s45, 0
      %p512 = por %p510, %p511
      %s513 = ssub.s32 %s39, %s46
      %p514 = scmp.eq.s32.totalorder %s513, 0
      %s516 = sadd.s32 %s515, 1
      %s517 = scalar_select %p514, %s515, %s516
      %p520 = pneg %p514
      %p521 = scmp.eq.s32.totalorder %s39, 1
      %p522 = por %p520, %p521
      %p523 = scmp.ne.s32.totalorder %s515, %s518
      %p524 = scmp.eq.s32.totalorder %s39, 0
      %p525 = por %p523, %p524
      %p526 = scmp.ne.s32.totalorder %s515, %s518
      %p527 = scmp.eq.s32.totalorder %s44, 1
      %p528 = por %p526, %p527
      %p529 = scmp.ne.s32.totalorder %s518, %s519
      %p530 = scmp.eq.s32.totalorder %s44, 0
      %p531 = por %p529, %p530
      %p532 = scmp.ne.s32.totalorder %s518, %s519
      %p533 = scmp.eq.s32.totalorder %s45, 1
      %p534 = por %p532, %p533
      %p536 = scmp.ne.s32.totalorder %s519, %s535
      %p537 = scmp.eq.s32.totalorder %s45, 0
      %p538 = por %p536, %p537
      %s539 = ssub.s32 %s39, %s46
      %p540 = scmp.eq.s32.totalorder %s539, 0
      %s542 = sadd.s32 %s541, 1
      %s543 = scalar_select %p540, %s541, %s542
      %p546 = pneg %p540
      %p547 = scmp.eq.s32.totalorder %s39, 1
      %p548 = por %p546, %p547
      %p549 = scmp.ne.s32.totalorder %s541, %s544
      %p550 = scmp.eq.s32.totalorder %s39, 0
      %p551 = por %p549, %p550
      %p552 = scmp.ne.s32.totalorder %s541, %s544
      %p553 = scmp.eq.s32.totalorder %s44, 1
      %p554 = por %p552, %p553
      %p555 = scmp.ne.s32.totalorder %s544, %s545
      %p556 = scmp.eq.s32.totalorder %s44, 0
      %p557 = por %p555, %p556
      %p558 = scmp.ne.s32.totalorder %s544, %s545
      %p559 = scmp.eq.s32.totalorder %s45, 1
      %p560 = por %p558, %p559
      %p562 = scmp.ne.s32.totalorder %s545, %s561
      %p563 = scmp.eq.s32.totalorder %s45, 0
      %p564 = por %p562, %p563
      %s565 = ssub.s32 %s39, %s46
      %p566 = scmp.eq.s32.totalorder %s565, 0
      %s568 = sadd.s32 %s567, 1
      %s569 = scalar_select %p566, %s567, %s568
      %p572 = pneg %p566
      %p573 = scmp.eq.s32.totalorder %s39, 1
      %p574 = por %p572, %p573
      %p575 = scmp.ne.s32.totalorder %s567, %s570
      %p576 = scmp.eq.s32.totalorder %s39, 0
      %p577 = por %p575, %p576
      %p578 = scmp.ne.s32.totalorder %s567, %s570
      %p579 = scmp.eq.s32.totalorder %s44, 1
      %p580 = por %p578, %p579
      %p581 = scmp.ne.s32.totalorder %s570, %s571
      %p582 = scmp.eq.s32.totalorder %s44, 0
      %p583 = por %p581, %p582
      %p584 = scmp.ne.s32.totalorder %s570, %s571
      %p585 = scmp.eq.s32.totalorder %s45, 1
      %p586 = por %p584, %p585
      %p588 = scmp.ne.s32.totalorder %s571, %s587
      %p589 = scmp.eq.s32.totalorder %s45, 0
      %p590 = por %p588, %p589
      %p591 = scmp.le.s32.totalorder 1, %s39
      %p592 = scmp.lt.s32.totalorder %s39, 3
      %p593 = pnand %p591, %p592
      %p594 = pneg %p593
      // Predicated region
      $region9: #{tpu_custom_call.1} parent=5 // pred_check
        _
      $region10: #{tpu_custom_call.1} parent=5 // pred_check_branch
        %596 = sbr.rel (%p593) target = $region12
      $region11: #{tpu_custom_call.1} parent=5 // pred_region
        %s597 = ssub.s32 %s39, 1
        // Predicated region
        $region13: #{tpu_custom_call.1} parent=11 // pred_check
          %p598 = pneg %p164
        $region14: #{tpu_custom_call.1} parent=11 // pred_check_branch
          %600 = sbr.rel (%p598) target = $region16
        $region15: #{tpu_custom_call.1} parent=11 // pred_region
          _
        $region16: #{tpu_custom_call.1} parent=11 // pred_fallthru
          _
        // Predicated region
        $region17: #{tpu_custom_call.1} parent=11 // pred_check
          %p601 = pneg %p185
        $region18: #{tpu_custom_call.1} parent=11 // pred_check_branch
          %603 = sbr.rel (%p601) target = $region20
        $region19: #{tpu_custom_call.1} parent=11 // pred_region
          _
        $region20: #{tpu_custom_call.1} parent=11 // pred_fallthru
          _
        // Predicated region
        $region21: #{tpu_custom_call.1} parent=11 // pred_check
          %p604 = pneg %p206
        $region22: #{tpu_custom_call.1} parent=11 // pred_check_branch
          %606 = sbr.rel (%p604) target = $region24
        $region23: #{tpu_custom_call.1} parent=11 // pred_region
          _
        $region24: #{tpu_custom_call.1} parent=11 // pred_fallthru
          _
        // Predicated region
        $region25: #{tpu_custom_call.1} parent=11 // pred_check
          %p607 = pneg %p227
        $region26: #{tpu_custom_call.1} parent=11 // pred_check_branch
          %609 = sbr.rel (%p607) target = $region28
        $region27: #{tpu_custom_call.1} parent=11 // pred_region
          _
        $region28: #{tpu_custom_call.1} parent=11 // pred_fallthru
          _
        // Predicated region
        $region29: #{tpu_custom_call.1} parent=11 // pred_check
          %p610 = pneg %p248
        $region30: #{tpu_custom_call.1} parent=11 // pred_check_branch
          %612 = sbr.rel (%p610) target = $region32
        $region31: #{tpu_custom_call.1} parent=11 // pred_region
          _
        $region32: #{tpu_custom_call.1} parent=11 // pred_fallthru
          _
        // Predicated region
        $region33: #{tpu_custom_call.1} parent=11 // pred_check
          %p613 = pneg %p269
        $region34: #{tpu_custom_call.1} parent=11 // pred_check_branch
          %615 = sbr.rel (%p613) target = $region36
        $region35: #{tpu_custom_call.1} parent=11 // pred_region
          _
        $region36: #{tpu_custom_call.1} parent=11 // pred_fallthru
          _
        // Predicated region
        $region37: #{tpu_custom_call.1} parent=11 // pred_check
          %p616 = pneg %p290
        $region38: #{tpu_custom_call.1} parent=11 // pred_check_branch
          %618 = sbr.rel (%p616) target = $region40
        $region39: #{tpu_custom_call.1} parent=11 // pred_region
          _
        $region40: #{tpu_custom_call.1} parent=11 // pred_fallthru
          _
        // Predicated region
        $region41: #{tpu_custom_call.1} parent=11 // pred_check
          %p619 = pneg %p311
        $region42: #{tpu_custom_call.1} parent=11 // pred_check_branch
          %621 = sbr.rel (%p619) target = $region44
        $region43: #{tpu_custom_call.1} parent=11 // pred_region
          _
        $region44: #{tpu_custom_call.1} parent=11 // pred_fallthru
          _
        // Predicated region
        $region45: #{tpu_custom_call.1} parent=11 // pred_check
          %p622 = pneg %p332
        $region46: #{tpu_custom_call.1} parent=11 // pred_check_branch
          %624 = sbr.rel (%p622) target = $region48
        $region47: #{tpu_custom_call.1} parent=11 // pred_region
          _
        $region48: #{tpu_custom_call.1} parent=11 // pred_fallthru
          _
        // Predicated region
        $region49: #{tpu_custom_call.1} parent=11 // pred_check
          %p625 = pneg %p353
        $region50: #{tpu_custom_call.1} parent=11 // pred_check_branch
          %627 = sbr.rel (%p625) target = $region52
        $region51: #{tpu_custom_call.1} parent=11 // pred_region
          _
        $region52: #{tpu_custom_call.1} parent=11 // pred_fallthru
          _
        // Predicated region
        $region53: #{tpu_custom_call.1} parent=11 // pred_check
          %p628 = pneg %p374
        $region54: #{tpu_custom_call.1} parent=11 // pred_check_branch
          %630 = sbr.rel (%p628) target = $region56
        $region55: #{tpu_custom_call.1} parent=11 // pred_region
          _
        $region56: #{tpu_custom_call.1} parent=11 // pred_fallthru
          _
        // Predicated region
        $region57: #{tpu_custom_call.1} parent=11 // pred_check
          %p631 = pneg %p395
        $region58: #{tpu_custom_call.1} parent=11 // pred_check_branch
          %633 = sbr.rel (%p631) target = $region60
        $region59: #{tpu_custom_call.1} parent=11 // pred_region
          _
        $region60: #{tpu_custom_call.1} parent=11 // pred_fallthru
          _
        // Predicated region
        $region61: #{tpu_custom_call.1} parent=11 // pred_check
          %p634 = pneg %p416
        $region62: #{tpu_custom_call.1} parent=11 // pred_check_branch
          %636 = sbr.rel (%p634) target = $region64
        $region63: #{tpu_custom_call.1} parent=11 // pred_region
          _
        $region64: #{tpu_custom_call.1} parent=11 // pred_fallthru
          _
        // Predicated region
        $region65: #{tpu_custom_call.1} parent=11 // pred_check
          %p637 = pneg %p437
        $region66: #{tpu_custom_call.1} parent=11 // pred_check_branch
          %639 = sbr.rel (%p637) target = $region68
        $region67: #{tpu_custom_call.1} parent=11 // pred_region
          _
        $region68: #{tpu_custom_call.1} parent=11 // pred_fallthru
          _
        // Predicated region
        $region69: #{tpu_custom_call.1} parent=11 // pred_check
          %p640 = pneg %p458
        $region70: #{tpu_custom_call.1} parent=11 // pred_check_branch
          %642 = sbr.rel (%p640) target = $region72
        $region71: #{tpu_custom_call.1} parent=11 // pred_region
          _
        $region72: #{tpu_custom_call.1} parent=11 // pred_fallthru
          _
        // Predicated region
        $region73: #{tpu_custom_call.1} parent=11 // pred_check
          %p643 = pneg %p479
        $region74: #{tpu_custom_call.1} parent=11 // pred_check_branch
          %645 = sbr.rel (%p643) target = $region76
        $region75: #{tpu_custom_call.1} parent=11 // pred_region
          _
        $region76: #{tpu_custom_call.1} parent=11 // pred_fallthru
          _
      $region12: #{tpu_custom_call.1} parent=5 // pred_fallthru
        _
      %p646 = scmp.lt.s32.totalorder %s39, 2
      // Predicated region
      $region77: #{tpu_custom_call.1} parent=5 // pred_check
        %p647 = pneg %p646
      $region78: #{tpu_custom_call.1} parent=5 // pred_check_branch
        %649 = sbr.rel (%p647) target = $region80
      $region79: #{tpu_custom_call.1} parent=5 // pred_region
        // Predicated region
        $region81: #{tpu_custom_call.1} parent=79 // pred_check
          %p650 = pneg %p59
        $region82: #{tpu_custom_call.1} parent=79 // pred_check_branch
          %652 = sbr.rel (%p650) target = $region84
        $region83: #{tpu_custom_call.1} parent=79 // pred_region
          %p653 = scmp.lt.s32.totalorder %s39, 1
          %s654 = scalar_select %p653, %s39, 1
          %s655 = smul.addr %s654, 8
          %s656 = scalar_lea.vmem %s0, %s655
        $region84: #{tpu_custom_call.1} parent=79 // pred_fallthru
          _
        // Predicated region
        $region85: #{tpu_custom_call.1} parent=79 // pred_check
          %p657 = pneg %p85
        $region86: #{tpu_custom_call.1} parent=79 // pred_check_branch
          %659 = sbr.rel (%p657) target = $region88
        $region87: #{tpu_custom_call.1} parent=79 // pred_region
          %p660 = scmp.lt.s32.totalorder %s39, 1
          %s661 = scalar_select %p660, %s39, 1
          %s662 = smul.addr %s661, 8
          %s663 = scalar_lea.vmem %s1, %s662
        $region88: #{tpu_custom_call.1} parent=79 // pred_fallthru
          _
        // Predicated region
        $region89: #{tpu_custom_call.1} parent=79 // pred_check
          %p664 = pneg %p111
        $region90: #{tpu_custom_call.1} parent=79 // pred_check_branch
          %666 = sbr.rel (%p664) target = $region92
        $region91: #{tpu_custom_call.1} parent=79 // pred_region
          %p667 = scmp.lt.s32.totalorder %s39, 1
          %s668 = scalar_select %p667, %s39, 1
          %s669 = smul.addr %s668, 4
          %s670 = scalar_lea.vmem %s2, %s669
        $region92: #{tpu_custom_call.1} parent=79 // pred_fallthru
          _
        // Predicated region
        $region93: #{tpu_custom_call.1} parent=79 // pred_check
          %p671 = pneg %p137
        $region94: #{tpu_custom_call.1} parent=79 // pred_check_branch
          %673 = sbr.rel (%p671) target = $region96
        $region95: #{tpu_custom_call.1} parent=79 // pred_region
          %p674 = scmp.lt.s32.totalorder %s39, 1
          %s675 = scalar_select %p674, %s39, 1
          %s676 = smul.addr %s675, 4
          %s677 = scalar_lea.vmem %s3, %s676
        $region96: #{tpu_custom_call.1} parent=79 // pred_fallthru
          _
      $region80: #{tpu_custom_call.1} parent=5 // pred_fallthru
        _
      %p678 = scmp.le.s32.totalorder 1, %s39
      %p679 = scmp.lt.s32.totalorder %s39, 3
      %p680 = pnand %p678, %p679
      %p681 = pneg %p680
      // Predicated region
      $region97: #{tpu_custom_call.1} parent=5 // pred_check
        _
      $region98: #{tpu_custom_call.1} parent=5 // pred_check_branch
        %683 = sbr.rel (%p680) target = $region100
      $region99: #{tpu_custom_call.1} parent=5 // pred_region
        %s684 = ssub.s32 %s39, 1
        %p685 = scmp.lt.s32.totalorder %s44, 1
        %s686 = scalar_select %p685, %s44, 1
        %s687 = smul.addr %s686, 8
        %s688 = scalar_lea.vmem %s0, %s687
        %p689 = pneg %p65
        %p690 = pneg %p62
        %p691 = scmp.lt.s32.totalorder %s44, 1
        %s692 = scalar_select %p691, %s44, 1
        %s693 = smul.addr %s692, 8
        %s694 = scalar_lea.vmem %s1, %s693
        %p695 = pneg %p91
        %p696 = pneg %p88
        %p697 = scmp.lt.s32.totalorder %s44, 1
        %s698 = scalar_select %p697, %s44, 1
        %s699 = smul.addr %s698, 4
        %s700 = scalar_lea.vmem %s2, %s699
        %p701 = pneg %p117
        %p702 = pneg %p114
        %p703 = scmp.lt.s32.totalorder %s44, 1
        %s704 = scalar_select %p703, %s44, 1
        %s705 = smul.addr %s704, 4
        %s706 = scalar_lea.vmem %s3, %s705
        %p707 = pneg %p143
        %p708 = pneg %p140
        %p709 = pneg %p164
        %p710 = pneg %p161
        %p711 = pneg %p185
        %p712 = pneg %p182
        %p713 = pneg %p206
        %p714 = pneg %p203
        %p715 = pneg %p227
        %p716 = pneg %p224
        %p717 = pneg %p248
        %p718 = pneg %p245
        %p719 = pneg %p269
        %p720 = pneg %p266
        %p721 = pneg %p290
        %p722 = pneg %p287
        %p723 = pneg %p311
        %p724 = pneg %p308
        %p725 = pneg %p332
        %p726 = pneg %p329
        %p727 = pneg %p353
        %p728 = pneg %p350
        %p729 = pneg %p374
        %p730 = pneg %p371
        %p731 = pneg %p395
        %p732 = pneg %p392
        %p733 = pneg %p416
        %p734 = pneg %p413
        %p735 = pneg %p437
        %p736 = pneg %p434
        %p737 = pneg %p458
        %p738 = pneg %p455
        %p739 = pneg %p479
        %p740 = pneg %p476
        %p741 = pneg %p505
        %p742 = pneg %p502
        %s743 = sand.u32 %s492, 1
        %s744 = scalar_lea.sflag [#allocation3], %s743
        %s745 = sand.u32 %s492, 1
        %s746 = smul.addr %s745, 8
        %s747 = scalar_lea.vmem [#allocation2], %s746
        %p748 = pneg %p531
        %p749 = pneg %p528
        %s750 = sand.u32 %s44, 1
        %s751 = scalar_lea.sflag [#allocation5], %s750
        %s752 = sand.u32 %s518, 1
        %s753 = smul.addr %s752, 16
        %s754 = scalar_lea.vmem [#allocation4], %s753
        %p755 = pneg %p557
        %p756 = pneg %p554
        %s757 = sand.u32 %s44, 1
        %s758 = scalar_lea.sflag [#allocation5], %s757
        %s759 = sand.u32 %s544, 1
        %s760 = smul.addr %s759, 16
        %s761 = scalar_lea.vmem [#allocation6], %s760
        %p762 = pneg %p583
        %p763 = pneg %p580
        %s764 = sand.u32 %s570, 1
        %s765 = scalar_lea.sflag [#allocation8], %s764
        %s766 = sand.u32 %s570, 1
        %s767 = smul.addr %s766, 8
        %s768 = scalar_lea.vmem [#allocation7], %s767
        %p769 = scmp.lt.s32.totalorder %s44, 1
        %s770 = scalar_select %p769, %s44, 1
        %s771 = smul.addr %s770, 8
        %s772 = scalar_lea.vmem %s0, %s771
        %p773 = scmp.lt.s32.totalorder %s44, 1
        %s774 = scalar_select %p773, %s44, 1
        %s775 = smul.addr %s774, 8
        %s776 = scalar_lea.vmem %s1, %s775
        %p777 = scmp.lt.s32.totalorder %s44, 1
        %s778 = scalar_select %p777, %s44, 1
        %s779 = smul.addr %s778, 4
        %s780 = scalar_lea.vmem %s2, %s779
        %p781 = scmp.lt.s32.totalorder %s44, 1
        %s782 = scalar_select %p781, %s44, 1
        %s783 = smul.addr %s782, 4
        %s784 = scalar_lea.vmem %s3, %s783
        %v786 = vld [vmem:[%s18] sm:$0xf]
        %v787 = vld [vmem:[%s19] sm:$0xf]
        %v788 = vld [vmem:[%s772] sm:$0xff]
        %v789 = vld [vmem:[%s776] sm:$0xff]
        %vm790 = vcmask 261120
        %v791 = vsel %vm790, %v788, 0.0
        %792 = vadd.xlane.f32.xlu0 %v791
        %v793 = vpop.xlane.xlu0 %792
        %v794 = vrcp.pop 32.0
        %v795 = vmul.f32 32.0, %v794
        %v796 = vsub.f32 1.0, %v795
        %v797 = vmul.f32 %v794, %v796
        %v798 = vadd.f32 %v794, %v797
        %vm799 = vweird.f32 %v794
        %v800 = vsel %vm799, %v794, %v798
        %v801 = vmul.f32 %v793, %v800
        %v802 = vsub.f32 %v788, %v801
        %v803 = vmul.f32 %v802, %v802
        %v804 = vsel %vm790, %v803, 0.0
        %805 = vadd.xlane.f32.xlu0 %v804
        %v806 = vpop.xlane.xlu0 %805
        %v807 = vmul.f32 %v806, %v800
        %v808 = vadd.f32 %v807, 1e-05
        %v809 = vrsqrt.pop %v808
        %v810 = vmul.f32 %v809, %v808
        %v811 = vmul.f32 %v810, %v809
        %v812 = vmul.f32 0.5, %v811
        %v813 = vsub.f32 1.5, %v812
        %v814 = vmul.f32 %v809, %v813
        %vm815 = vweird.f32 %v808
        %vm816 = vweird.f32 %v809
        %vm817 = vmor %vm815, %vm816
        %v818 = vsel %vm817, %v809, %v814
        %v819 = vmul.f32 %v802, %v818
        %v820 = vperm.slane %v786, 0
        %v821 = vmul.f32 %v819, %v820
        %v822 = vperm.slane %v787, 0
        %v823 = vadd.f32 %v821, %v822
        %v824 = vld [vmem:[%s4] sm:$0xf]
        %v825 = vld [vmem:[%s4 + $0x4] sm:$0xf]
        %v826 = vld [vmem:[%s4 + $0x8] sm:$0xf]
        %v827 = vld [vmem:[%s4 + $0xc] sm:$0xf]
        %v828 = vld [vmem:[%s4 + $0x10] sm:$0xf]
        %v829 = vld [vmem:[%s4 + $0x14] sm:$0xf]
        %v830 = vld [vmem:[%s4 + $0x18] sm:$0xf]
        %v831 = vld [vmem:[%s4 + $0x1c] sm:$0xf]
        %v832 = vld [vmem:[%s4 + $0x20] sm:$0xf]
        %v833 = vld [vmem:[%s4 + $0x24] sm:$0xf]
        %v834 = vld [vmem:[%s4 + $0x28] sm:$0xf]
        %v835 = vld [vmem:[%s4 + $0x2c] sm:$0xf]
        %v836 = vpack.c.bf16 %v823, %v823
        %v837 = vld [vmem:[%s5] sm:$0xff]
        %v838 = vld [vmem:[%s5 + $0x8] sm:$0xff]
        %v839 = vld [vmem:[%s5 + $0x10] sm:$0xff]
        %v840 = vld [vmem:[%s5 + $0x18] sm:$0xff]
        %v841 = vld [vmem:[%s5 + $0x20] sm:$0xff]
        %v842 = vld [vmem:[%s5 + $0x28] sm:$0xff]
        %v843 = vld [vmem:[%s5 + $0x30] sm:$0xff]
        %v844 = vld [vmem:[%s5 + $0x38] sm:$0xff]
        %v845 = vld [vmem:[%s5 + $0x40] sm:$0xff]
        %v846 = vld [vmem:[%s5 + $0x48] sm:$0xff]
        %v847 = vld [vmem:[%s5 + $0x50] sm:$0xff]
        %v848 = vld [vmem:[%s5 + $0x58] sm:$0xff]
        %850 = vset.pattern.permute.xlu0 0
        %851 = vperm.xlu0 %850, %v837
        %v852 = vpop.permute.xlu0 %851
        %855 = vset.pattern.permute.xlu0 0
        %856 = vperm.xlu0 %855, %v838
        %v857 = vpop.permute.xlu0 %856
        %860 = vset.pattern.permute.xlu0 0
        %861 = vperm.xlu0 %860, %v839
        %v862 = vpop.permute.xlu0 %861
        %865 = vset.pattern.permute.xlu0 0
        %866 = vperm.xlu0 %865, %v840
        %v867 = vpop.permute.xlu0 %866
        %870 = vset.pattern.permute.xlu0 0
        %871 = vperm.xlu0 %870, %v841
        %v872 = vpop.permute.xlu0 %871
        %875 = vset.pattern.permute.xlu0 0
        %876 = vperm.xlu0 %875, %v842
        %v877 = vpop.permute.xlu0 %876
        %880 = vset.pattern.permute.xlu0 0
        %881 = vperm.xlu0 %880, %v843
        %v882 = vpop.permute.xlu0 %881
        %885 = vset.pattern.permute.xlu0 0
        %886 = vperm.xlu0 %885, %v844
        %v887 = vpop.permute.xlu0 %886
        %890 = vset.pattern.permute.xlu0 0
        %891 = vperm.xlu0 %890, %v845
        %v892 = vpop.permute.xlu0 %891
        %895 = vset.pattern.permute.xlu0 0
        %896 = vperm.xlu0 %895, %v846
        %v897 = vpop.permute.xlu0 %896
        %900 = vset.pattern.permute.xlu0 0
        %901 = vperm.xlu0 %900, %v847
        %v902 = vpop.permute.xlu0 %901
        %905 = vset.pattern.permute.xlu0 0
        %906 = vperm.xlu0 %905, %v848
        %v907 = vpop.permute.xlu0 %906
        %v921 = vunpack.c.l.b16 %v824
        %v922 = vunpack.c.l.b16 %v825
        %v923 = vunpack.c.l.b16 %v826
        %v924 = vunpack.c.l.b16 %v827
        %v925 = vunpack.c.l.b16 %v828
        %v926 = vunpack.c.l.b16 %v829
        %v927 = vunpack.c.l.b16 %v830
        %v928 = vunpack.c.l.b16 %v831
        %v929 = vunpack.c.l.b16 %v832
        %v930 = vunpack.c.l.b16 %v833
        %v931 = vunpack.c.l.b16 %v834
        %v932 = vunpack.c.l.b16 %v835
        %v933 = vpack.c.b16 %v922, %v921
        %v934 = vpack.c.b16 %v924, %v923
        %v935 = vpack.c.b16 %v926, %v925
        %v936 = vpack.c.b16 %v928, %v927
        %v937 = vpack.c.b16 %v930, %v929
        %v938 = vpack.c.b16 %v932, %v931
        %v940 = vsel %vm790, %v933, 0
        %v943 = vsel %vm790, %v934, 0
        %v946 = vsel %vm790, %v935, 0
        %v949 = vsel %vm790, %v936, 0
        %v952 = vsel %vm790, %v937, 0
        %v955 = vsel %vm790, %v938, 0
        %v958 = vsel %vm790, %v836, 0
        %960 = vmatpush.bf16.xpose.msra.mxu0 0
        %961 = vmatpush.bf16.xpose.msra.mxu0 0
        %962 = vmatpush.bf16.xpose.msra.mxu0 0
        %963 = vmatpush.bf16.xpose.msra.mxu0 0
        %964 = vmatpush.bf16.xpose.msra.mxu0 0
        %965 = vmatpush.bf16.xpose.msra.mxu0 0
        %966 = vmatpush.bf16.xpose.msra.mxu0 0
        %967 = vmatpush.bf16.xpose.msra.mxu0 %v958
        %968 = vmatmul.bf16.gmra.mxu0 %v940
        %v969 = vpop.f32.mrf.mxu0
        %v970 = vadd.f32 %v852, %v969
        %v971 = vpop.f32.mrf.mxu0
        %v972 = vadd.f32 %v857, %v971
        %973 = vmatmul.bf16.gmra.mxu0 %v943
        %v974 = vpop.f32.mrf.mxu0
        %v975 = vadd.f32 %v862, %v974
        %v976 = vpop.f32.mrf.mxu0
        %v977 = vadd.f32 %v867, %v976
        %978 = vmatmul.bf16.gmra.mxu0 %v946
        %v979 = vpop.f32.mrf.mxu0
        %v980 = vadd.f32 %v872, %v979
        %v981 = vpop.f32.mrf.mxu0
        %v982 = vadd.f32 %v877, %v981
        %983 = vmatmul.bf16.gmra.mxu0 %v949
        %v984 = vpop.f32.mrf.mxu0
        %v985 = vadd.f32 %v882, %v984
        %v986 = vpop.f32.mrf.mxu0
        %v987 = vadd.f32 %v887, %v986
        %988 = vmatmul.bf16.gmra.mxu0 %v952
        %v989 = vpop.f32.mrf.mxu0
        %v990 = vadd.f32 %v892, %v989
        %v991 = vpop.f32.mrf.mxu0
        %v992 = vadd.f32 %v897, %v991
        %993 = vmatmul.bf16.gmra.mxu0 %v955
        %v994 = vpop.f32.mrf.mxu0
        %v995 = vadd.f32 %v902, %v994
        %v996 = vpop.f32.mrf.mxu0
        %v997 = vadd.f32 %v907, %v996
        %998 = vdwg.mxu0
        %v999 = vld [vmem:[%s780] sm:$0xf]
        %1000 = vxpose.xlu0.b32.start [1/16] %v970, 128
        %1001 = vxpose.xlu0.b32.cont [2/16] 0.0, 128
        %1002 = vxpose.xlu0.b32.cont [3/16] 0.0, 128
        %1003 = vxpose.xlu0.b32.cont [4/16] 0.0, 128
        %1004 = vxpose.xlu0.b32.cont [5/16] 0.0, 128
        %1005 = vxpose.xlu0.b32.cont [6/16] 0.0, 128
        %1006 = vxpose.xlu0.b32.cont [7/16] 0.0, 128
        %1007 = vxpose.xlu0.b32.cont [8/16] 0.0, 128
        %1008 = vxpose.xlu0.b32.cont [9/16] 0.0, 128
        %1009 = vxpose.xlu0.b32.cont [10/16] 0.0, 128
        %1010 = vxpose.xlu0.b32.cont [11/16] 0.0, 128
        %1011 = vxpose.xlu0.b32.cont [12/16] 0.0, 128
        %1012 = vxpose.xlu0.b32.cont [13/16] 0.0, 128
        %1013 = vxpose.xlu0.b32.cont [14/16] 0.0, 128
        %1014 = vxpose.xlu0.b32.cont [15/16] 0.0, 128
        %1015 = vxpose.xlu0.b32.end [16/16] 0.0, 128
        %v1016 = vpop.trf.xlu0
        %v1017 = vpop.trf.xlu0
        %v1018 = vpop.trf.xlu0
        %v1019 = vpop.trf.xlu0
        %v1020 = vpop.trf.xlu0
        %v1021 = vpop.trf.xlu0
        %v1022 = vpop.trf.xlu0
        %v1023 = vpop.trf.xlu0
        %v1024 = vpop.trf.xlu0
        %v1025 = vpop.trf.xlu0
        %v1026 = vpop.trf.xlu0
        %v1027 = vpop.trf.xlu0
        %v1028 = vpop.trf.xlu0
        %v1029 = vpop.trf.xlu0
        %v1030 = vpop.trf.xlu0
        %v1031 = vpop.trf.xlu0
        %1032 = vxpose.xlu0.b32.start [1/16] %v972, 128
        %1033 = vxpose.xlu0.b32.cont [2/16] 0.0, 128
        %1034 = vxpose.xlu0.b32.cont [3/16] 0.0, 128
        %1035 = vxpose.xlu0.b32.cont [4/16] 0.0, 128
        %1036 = vxpose.xlu0.b32.cont [5/16] 0.0, 128
        %1037 = vxpose.xlu0.b32.cont [6/16] 0.0, 128
        %1038 = vxpose.xlu0.b32.cont [7/16] 0.0, 128
        %1039 = vxpose.xlu0.b32.cont [8/16] 0.0, 128
        %1040 = vxpose.xlu0.b32.cont [9/16] 0.0, 128
        %1041 = vxpose.xlu0.b32.cont [10/16] 0.0, 128
        %1042 = vxpose.xlu0.b32.cont [11/16] 0.0, 128
        %1043 = vxpose.xlu0.b32.cont [12/16] 0.0, 128
        %1044 = vxpose.xlu0.b32.cont [13/16] 0.0, 128
        %1045 = vxpose.xlu0.b32.cont [14/16] 0.0, 128
        %1046 = vxpose.xlu0.b32.cont [15/16] 0.0, 128
        %1047 = vxpose.xlu0.b32.end [16/16] 0.0, 128
        %v1048 = vpop.trf.xlu0
        %v1049 = vpop.trf.xlu0
        %v1050 = vpop.trf.xlu0
        %v1051 = vpop.trf.xlu0
        %v1052 = vpop.trf.xlu0
        %v1053 = vpop.trf.xlu0
        %v1054 = vpop.trf.xlu0
        %v1055 = vpop.trf.xlu0
        %v1056 = vpop.trf.xlu0
        %v1057 = vpop.trf.xlu0
        %v1058 = vpop.trf.xlu0
        %v1059 = vpop.trf.xlu0
        %v1060 = vpop.trf.xlu0
        %v1061 = vpop.trf.xlu0
        %v1062 = vpop.trf.xlu0
        %v1063 = vpop.trf.xlu0
        %1064 = vxpose.xlu0.b32.start [1/16] %v975, 128
        %1065 = vxpose.xlu0.b32.cont [2/16] 0.0, 128
        %1066 = vxpose.xlu0.b32.cont [3/16] 0.0, 128
        %1067 = vxpose.xlu0.b32.cont [4/16] 0.0, 128
        %1068 = vxpose.xlu0.b32.cont [5/16] 0.0, 128
        %1069 = vxpose.xlu0.b32.cont [6/16] 0.0, 128
        %1070 = vxpose.xlu0.b32.cont [7/16] 0.0, 128
        %1071 = vxpose.xlu0.b32.cont [8/16] 0.0, 128
        %1072 = vxpose.xlu0.b32.cont [9/16] 0.0, 128
        %1073 = vxpose.xlu0.b32.cont [10/16] 0.0, 128
        %1074 = vxpose.xlu0.b32.cont [11/16] 0.0, 128
        %1075 = vxpose.xlu0.b32.cont [12/16] 0.0, 128
        %1076 = vxpose.xlu0.b32.cont [13/16] 0.0, 128
        %1077 = vxpose.xlu0.b32.cont [14/16] 0.0, 128
        %1078 = vxpose.xlu0.b32.cont [15/16] 0.0, 128
        %1079 = vxpose.xlu0.b32.end [16/16] 0.0, 128
        %v1080 = vpop.trf.xlu0
        %v1081 = vpop.trf.xlu0
        %v1082 = vpop.trf.xlu0
        %v1083 = vpop.trf.xlu0
        %v1084 = vpop.trf.xlu0
        %v1085 = vpop.trf.xlu0
        %v1086 = vpop.trf.xlu0
        %v1087 = vpop.trf.xlu0
        %v1088 = vpop.trf.xlu0
        %v1089 = vpop.trf.xlu0
        %v1090 = vpop.trf.xlu0
        %v1091 = vpop.trf.xlu0
        %v1092 = vpop.trf.xlu0
        %v1093 = vpop.trf.xlu0
        %v1094 = vpop.trf.xlu0
        %v1095 = vpop.trf.xlu0
        %1096 = vxpose.xlu0.b32.start [1/16] %v977, 128
        %1097 = vxpose.xlu0.b32.cont [2/16] 0.0, 128
        %1098 = vxpose.xlu0.b32.cont [3/16] 0.0, 128
        %1099 = vxpose.xlu0.b32.cont [4/16] 0.0, 128
        %1100 = vxpose.xlu0.b32.cont [5/16] 0.0, 128
        %1101 = vxpose.xlu0.b32.cont [6/16] 0.0, 128
        %1102 = vxpose.xlu0.b32.cont [7/16] 0.0, 128
        %1103 = vxpose.xlu0.b32.cont [8/16] 0.0, 128
        %1104 = vxpose.xlu0.b32.cont [9/16] 0.0, 128
        %1105 = vxpose.xlu0.b32.cont [10/16] 0.0, 128
        %1106 = vxpose.xlu0.b32.cont [11/16] 0.0, 128
        %1107 = vxpose.xlu0.b32.cont [12/16] 0.0, 128
        %1108 = vxpose.xlu0.b32.cont [13/16] 0.0, 128
        %1109 = vxpose.xlu0.b32.cont [14/16] 0.0, 128
        %1110 = vxpose.xlu0.b32.cont [15/16] 0.0, 128
        %1111 = vxpose.xlu0.b32.end [16/16] 0.0, 128
        %v1112 = vpop.trf.xlu0
        %v1113 = vpop.trf.xlu0
        %v1114 = vpop.trf.xlu0
        %v1115 = vpop.trf.xlu0
        %v1116 = vpop.trf.xlu0
        %v1117 = vpop.trf.xlu0
        %v1118 = vpop.trf.xlu0
        %v1119 = vpop.trf.xlu0
        %v1120 = vpop.trf.xlu0
        %v1121 = vpop.trf.xlu0
        %v1122 = vpop.trf.xlu0
        %v1123 = vpop.trf.xlu0
        %v1124 = vpop.trf.xlu0
        %v1125 = vpop.trf.xlu0
        %v1126 = vpop.trf.xlu0
        %v1127 = vpop.trf.xlu0
        %v1128 = vpack.c.bf16 %v1016, %v1016
        %v1129 = vpack.c.bf16 %v1048, %v1048
        %v1130 = vpack.c.bf16 %v1080, %v1080
        %v1131 = vpack.c.bf16 %v1112, %v1112
        %v1132 = vpack.c.bf16 %v980, %v980
        %v1133 = vpack.c.bf16 %v982, %v982
        %v1134 = vpack.c.bf16 %v985, %v985
        %v1135 = vpack.c.bf16 %v987, %v987
        %vm1136 = vcmask 64512
        %v1138 = vsel %vm1136, %v1128, 0
        %vm1140 = vcmask 1043456
        %v1142 = vsel %vm1140, %v1132, 0
        %1144 = vmatpush.bf16.msra.mxu0 0
        %1145 = vmatpush.bf16.msra.mxu0 0
        %1146 = vmatpush.bf16.msra.mxu0 0
        %1147 = vmatpush.bf16.msra.mxu0 0
        %1148 = vmatpush.bf16.msra.mxu0 0
        %1149 = vmatpush.bf16.msra.mxu0 0
        %1150 = vmatpush.bf16.msra.mxu0 0
        %1151 = vmatpush.bf16.msra.mxu0 %v1142
        %1152 = vmatmul.bf16.gmra.mxu0 %v1138
        %v1153 = vpop.f32.mrf.mxu0
        %v1154 = vadd.f32 0.0, %v1153
        %v1155 = vpop.f32.mrf.mxu0
        %1156 = vdwg.mxu0
        %v1158 = vsel %vm1136, %v1129, 0
        %v1161 = vsel %vm1140, %v1133, 0
        %1163 = vmatpush.bf16.msra.mxu0 0
        %1164 = vmatpush.bf16.msra.mxu0 0
        %1165 = vmatpush.bf16.msra.mxu0 0
        %1166 = vmatpush.bf16.msra.mxu0 0
        %1167 = vmatpush.bf16.msra.mxu0 0
        %1168 = vmatpush.bf16.msra.mxu0 0
        %1169 = vmatpush.bf16.msra.mxu0 0
        %1170 = vmatpush.bf16.msra.mxu0 %v1161
        %1171 = vmatmul.bf16.gmra.mxu0 %v1158
        %v1172 = vpop.f32.mrf.mxu0
        %v1173 = vadd.f32 0.0, %v1172
        %v1174 = vpop.f32.mrf.mxu0
        %1175 = vdwg.mxu0
        %v1177 = vsel %vm1136, %v1130, 0
        %v1180 = vsel %vm1140, %v1134, 0
        %1182 = vmatpush.bf16.msra.mxu0 0
        %1183 = vmatpush.bf16.msra.mxu0 0
        %1184 = vmatpush.bf16.msra.mxu0 0
        %1185 = vmatpush.bf16.msra.mxu0 0
        %1186 = vmatpush.bf16.msra.mxu0 0
        %1187 = vmatpush.bf16.msra.mxu0 0
        %1188 = vmatpush.bf16.msra.mxu0 0
        %1189 = vmatpush.bf16.msra.mxu0 %v1180
        %1190 = vmatmul.bf16.gmra.mxu0 %v1177
        %v1191 = vpop.f32.mrf.mxu0
        %v1192 = vadd.f32 0.0, %v1191
        %v1193 = vpop.f32.mrf.mxu0
        %1194 = vdwg.mxu0
        %v1196 = vsel %vm1136, %v1131, 0
        %v1199 = vsel %vm1140, %v1135, 0
        %1201 = vmatpush.bf16.msra.mxu0 0
        %1202 = vmatpush.bf16.msra.mxu0 0
        %1203 = vmatpush.bf16.msra.mxu0 0
        %1204 = vmatpush.bf16.msra.mxu0 0
        %1205 = vmatpush.bf16.msra.mxu0 0
        %1206 = vmatpush.bf16.msra.mxu0 0
        %1207 = vmatpush.bf16.msra.mxu0 0
        %1208 = vmatpush.bf16.msra.mxu0 %v1199
        %1209 = vmatmul.bf16.gmra.mxu0 %v1196
        %v1210 = vpop.f32.mrf.mxu0
        %v1211 = vadd.f32 0.0, %v1210
        %v1212 = vpop.f32.mrf.mxu0
        %1213 = vdwg.mxu0
        %v1214 = vmul.f32 %v1154, 0.35355338
        %v1215 = vmul.f32 %v1173, 0.35355338
        %v1216 = vmul.f32 %v1192, 0.35355338
        %v1217 = vmul.f32 %v1211, 0.35355338
        %v1218 = vunpack.c.l.bf16 %v999
        %v1219 = vadd.f32 %v1214, %v1218
        %v1220 = vadd.f32 %v1215, %v1218
        %v1221 = vadd.f32 %v1216, %v1218
        %v1222 = vadd.f32 %v1217, %v1218
        %v1223 = vsel %vm1136, %v1219, -inf
        %1224 = vmax.xlane.f32.xlu0 %v1223
        %v1225 = vpop.xlane.xlu0 %1224
        %v1226 = vsel %vm1136, %v1220, -inf
        %1227 = vmax.xlane.f32.xlu0 %v1226
        %v1228 = vpop.xlane.xlu0 %1227
        %v1229 = vsel %vm1136, %v1221, -inf
        %1230 = vmax.xlane.f32.xlu0 %v1229
        %v1231 = vpop.xlane.xlu0 %1230
        %v1232 = vsel %vm1136, %v1222, -inf
        %1233 = vmax.xlane.f32.xlu0 %v1232
        %v1234 = vpop.xlane.xlu0 %1233
        %v1235 = vsub.f32 %v1219, %v1225
        %v1236 = vsub.f32 %v1220, %v1228
        %v1237 = vsub.f32 %v1221, %v1231
        %v1238 = vsub.f32 %v1222, %v1234
        %v1239 = vmul.f32 %v1235, 1.442695
        %v1240 = vpow.pop %v1239
        %v1241 = vmul.f32 %v1236, 1.442695
        %v1242 = vpow.pop %v1241
        %v1243 = vmul.f32 %v1237, 1.442695
        %v1244 = vpow.pop %v1243
        %v1245 = vmul.f32 %v1238, 1.442695
        %v1246 = vpow.pop %v1245
        %v1247 = vsel %vm1136, %v1240, 0.0
        %1248 = vadd.xlane.f32.xlu0 %v1247
        %v1249 = vpop.xlane.xlu0 %1248
        %v1250 = vsel %vm1136, %v1242, 0.0
        %1251 = vadd.xlane.f32.xlu0 %v1250
        %v1252 = vpop.xlane.xlu0 %1251
        %v1253 = vsel %vm1136, %v1244, 0.0
        %1254 = vadd.xlane.f32.xlu0 %v1253
        %v1255 = vpop.xlane.xlu0 %1254
        %v1256 = vsel %vm1136, %v1246, 0.0
        %1257 = vadd.xlane.f32.xlu0 %v1256
        %v1258 = vpop.xlane.xlu0 %1257
        %v1259 = vrcp.pop %v1249
        %v1260 = vrcp.pop %v1252
        %v1261 = vrcp.pop %v1255
        %v1262 = vrcp.pop %v1258
        %v1263 = vmul.f32 %v1240, %v1259
        %v1264 = vmul.f32 %v1242, %v1260
        %v1265 = vmul.f32 %v1244, %v1261
        %v1266 = vmul.f32 %v1246, %v1262
        %v1267 = vpack.c.bf16 %v1263, %v1263
        %v1268 = vpack.c.bf16 %v1264, %v1264
        %v1269 = vpack.c.bf16 %v1265, %v1265
        %v1270 = vpack.c.bf16 %v1266, %v1266
        %vm1271 = vcmask 60416
        %1272 = vst.msk [vmem:[%s754] sm:$0xf] %vm1271, %v1267
        %1273 = vst.msk [vmem:[%s754 + $0x4] sm:$0xf] %vm1271, %v1268
        %1274 = vst.msk [vmem:[%s754 + $0x8] sm:$0xf] %vm1271, %v1269
        %1275 = vst.msk [vmem:[%s754 + $0xc] sm:$0xf] %vm1271, %v1270
        %v1276 = vpack.c.bf16 %v990, %v990
        %v1277 = vpack.c.bf16 %v992, %v992
        %v1278 = vpack.c.bf16 %v995, %v995
        %v1279 = vpack.c.bf16 %v997, %v997
        %v1281 = vsel %vm1136, %v1267, 0
        %v1284 = vsel %vm1136, %v1276, 0
        %1286 = vmatpush.bf16.xpose.msra.mxu0 0
        %1287 = vmatpush.bf16.xpose.msra.mxu0 0
        %1288 = vmatpush.bf16.xpose.msra.mxu0 0
        %1289 = vmatpush.bf16.xpose.msra.mxu0 0
        %1290 = vmatpush.bf16.xpose.msra.mxu0 0
        %1291 = vmatpush.bf16.xpose.msra.mxu0 0
        %1292 = vmatpush.bf16.xpose.msra.mxu0 0
        %1293 = vmatpush.bf16.xpose.msra.mxu0 %v1284
        %1294 = vmatmul.bf16.gmra.mxu0 %v1281
        %v1295 = vpop.f32.mrf.mxu0
        %v1296 = vadd.f32 0.0, %v1295
        %v1297 = vpop.f32.mrf.mxu0
        %1298 = vdwg.mxu0
        %v1300 = vsel %vm1136, %v1268, 0
        %v1303 = vsel %vm1136, %v1277, 0
        %1305 = vmatpush.bf16.xpose.msra.mxu0 0
        %1306 = vmatpush.bf16.xpose.msra.mxu0 0
        %1307 = vmatpush.bf16.xpose.msra.mxu0 0
        %1308 = vmatpush.bf16.xpose.msra.mxu0 0
        %1309 = vmatpush.bf16.xpose.msra.mxu0 0
        %1310 = vmatpush.bf16.xpose.msra.mxu0 0
        %1311 = vmatpush.bf16.xpose.msra.mxu0 0
        %1312 = vmatpush.bf16.xpose.msra.mxu0 %v1303
        %1313 = vmatmul.bf16.gmra.mxu0 %v1300
        %v1314 = vpop.f32.mrf.mxu0
        %v1315 = vadd.f32 0.0, %v1314
        %v1316 = vpop.f32.mrf.mxu0
        %1317 = vdwg.mxu0
        %v1319 = vsel %vm1136, %v1269, 0
        %v1322 = vsel %vm1136, %v1278, 0
        %1324 = vmatpush.bf16.xpose.msra.mxu0 0
        %1325 = vmatpush.bf16.xpose.msra.mxu0 0
        %1326 = vmatpush.bf16.xpose.msra.mxu0 0
        %1327 = vmatpush.bf16.xpose.msra.mxu0 0
        %1328 = vmatpush.bf16.xpose.msra.mxu0 0
        %1329 = vmatpush.bf16.xpose.msra.mxu0 0
        %1330 = vmatpush.bf16.xpose.msra.mxu0 0
        %1331 = vmatpush.bf16.xpose.msra.mxu0 %v1322
        %1332 = vmatmul.bf16.gmra.mxu0 %v1319
        %v1333 = vpop.f32.mrf.mxu0
        %v1334 = vadd.f32 0.0, %v1333
        %v1335 = vpop.f32.mrf.mxu0
        %1336 = vdwg.mxu0
        %v1338 = vsel %vm1136, %v1270, 0
        %v1341 = vsel %vm1136, %v1279, 0
        %1343 = vmatpush.bf16.xpose.msra.mxu0 0
        %1344 = vmatpush.bf16.xpose.msra.mxu0 0
        %1345 = vmatpush.bf16.xpose.msra.mxu0 0
        %1346 = vmatpush.bf16.xpose.msra.mxu0 0
        %1347 = vmatpush.bf16.xpose.msra.mxu0 0
        %1348 = vmatpush.bf16.xpose.msra.mxu0 0
        %1349 = vmatpush.bf16.xpose.msra.mxu0 0
        %1350 = vmatpush.bf16.xpose.msra.mxu0 %v1341
        %1351 = vmatmul.bf16.gmra.mxu0 %v1338
        %v1352 = vpop.f32.mrf.mxu0
        %v1353 = vadd.f32 0.0, %v1352
        %v1354 = vpop.f32.mrf.mxu0
        %1355 = vdwg.mxu0
        %v1356 = vpack.c.bf16 %v1296, %v1296
        %v1357 = vpack.c.bf16 %v1315, %v1315
        %v1358 = vpack.c.bf16 %v1334, %v1334
        %v1359 = vpack.c.bf16 %v1353, %v1353
        %v1360 = vld [vmem:[%s6] sm:$0xf]
        %v1361 = vld [vmem:[%s6 + $0x4] sm:$0xf]
        %v1362 = vld [vmem:[%s6 + $0x8] sm:$0xf]
        %v1363 = vld [vmem:[%s6 + $0xc] sm:$0xf]
        %v1365 = vsel %vm1136, %v1356, 0
        %v1368 = vsel %vm1140, %v1360, 0
        %1370 = vmatpush.bf16.msra.mxu0 0
        %1371 = vmatpush.bf16.msra.mxu0 0
        %1372 = vmatpush.bf16.msra.mxu0 0
        %1373 = vmatpush.bf16.msra.mxu0 0
        %1374 = vmatpush.bf16.msra.mxu0 0
        %1375 = vmatpush.bf16.msra.mxu0 0
        %1376 = vmatpush.bf16.msra.mxu0 0
        %1377 = vmatpush.bf16.msra.mxu0 %v1368
        %1378 = vmatmul.bf16.gmra.mxu0 %v1365
        %v1379 = vpop.f32.mrf.mxu0
        %v1380 = vadd.f32 0.0, %v1379
        %v1381 = vpop.f32.mrf.mxu0
        %1382 = vdwg.mxu0
        %v1384 = vsel %vm1136, %v1357, 0
        %v1387 = vsel %vm1140, %v1361, 0
        %1389 = vmatpush.bf16.msra.mxu0 0
        %1390 = vmatpush.bf16.msra.mxu0 0
        %1391 = vmatpush.bf16.msra.mxu0 0
        %1392 = vmatpush.bf16.msra.mxu0 0
        %1393 = vmatpush.bf16.msra.mxu0 0
        %1394 = vmatpush.bf16.msra.mxu0 0
        %1395 = vmatpush.bf16.msra.mxu0 0
        %1396 = vmatpush.bf16.msra.mxu0 %v1387
        %1397 = vmatmul.bf16.gmra.mxu0 %v1384
        %v1398 = vpop.f32.mrf.mxu0
        %v1399 = vadd.f32 0.0, %v1398
        %v1400 = vpop.f32.mrf.mxu0
        %1401 = vdwg.mxu0
        %v1403 = vsel %vm1136, %v1358, 0
        %v1406 = vsel %vm1140, %v1362, 0
        %1408 = vmatpush.bf16.msra.mxu0 0
        %1409 = vmatpush.bf16.msra.mxu0 0
        %1410 = vmatpush.bf16.msra.mxu0 0
        %1411 = vmatpush.bf16.msra.mxu0 0
        %1412 = vmatpush.bf16.msra.mxu0 0
        %1413 = vmatpush.bf16.msra.mxu0 0
        %1414 = vmatpush.bf16.msra.mxu0 0
        %1415 = vmatpush.bf16.msra.mxu0 %v1406
        %1416 = vmatmul.bf16.gmra.mxu0 %v1403
        %v1417 = vpop.f32.mrf.mxu0
        %v1418 = vadd.f32 0.0, %v1417
        %v1419 = vpop.f32.mrf.mxu0
        %1420 = vdwg.mxu0
        %v1422 = vsel %vm1136, %v1359, 0
        %v1425 = vsel %vm1140, %v1363, 0
        %1427 = vmatpush.bf16.msra.mxu0 0
        %1428 = vmatpush.bf16.msra.mxu0 0
        %1429 = vmatpush.bf16.msra.mxu0 0
        %1430 = vmatpush.bf16.msra.mxu0 0
        %1431 = vmatpush.bf16.msra.mxu0 0
        %1432 = vmatpush.bf16.msra.mxu0 0
        %1433 = vmatpush.bf16.msra.mxu0 0
        %1434 = vmatpush.bf16.msra.mxu0 %v1425
        %1435 = vmatmul.bf16.gmra.mxu0 %v1422
        %v1436 = vpop.f32.mrf.mxu0
        %v1437 = vadd.f32 0.0, %v1436
        %v1438 = vpop.f32.mrf.mxu0
        %1439 = vdwg.mxu0
        %v1440 = vsel %vm790, %v1380, 0.0
        %v1441 = vsel %vm790, %v1399, 0.0
        %v1442 = vadd.f32 %v1440, %v1441
        %v1443 = vsel %vm790, %v1418, 0.0
        %v1444 = vadd.f32 %v1442, %v1443
        %v1445 = vsel %vm790, %v1437, 0.0
        %v1446 = vadd.f32 %v1444, %v1445
        %v1447 = vld [vmem:[%s7] sm:$0x1]
        %v1449 = vperm.slane %v1447, 0
        %v1451 = vadd.f32 %v1446, %v1449
        %v1452 = vadd.f32 %v788, %v1451
        %v1453 = vsel %vm790, %v1452, 0.0
        %1454 = vadd.xlane.f32.xlu0 %v1453
        %v1455 = vpop.xlane.xlu0 %1454
        %v1456 = vmul.f32 %v1455, %v800
        %v1457 = vsub.f32 %v1452, %v1456
        %v1458 = vmul.f32 %v1457, %v1457
        %v1459 = vsel %vm790, %v1458, 0.0
        %1460 = vadd.xlane.f32.xlu0 %v1459
        %v1461 = vpop.xlane.xlu0 %1460
        %v1462 = vmul.f32 %v1461, %v800
        %v1463 = vadd.f32 %v1462, 1e-05
        %v1464 = vrsqrt.pop %v1463
        %v1465 = vmul.f32 %v1464, %v1463
        %v1466 = vmul.f32 %v1465, %v1464
        %v1467 = vmul.f32 0.5, %v1466
        %v1468 = vsub.f32 1.5, %v1467
        %v1469 = vmul.f32 %v1464, %v1468
        %vm1470 = vweird.f32 %v1463
        %vm1471 = vweird.f32 %v1464
        %vm1472 = vmor %vm1470, %vm1471
        %v1473 = vsel %vm1472, %v1464, %v1469
        %v1474 = vmul.f32 %v1457, %v1473
        %v1475 = vperm.slane %v786, 1
        %v1476 = vmul.f32 %v1474, %v1475
        %v1477 = vperm.slane %v787, 1
        %v1478 = vadd.f32 %v1476, %v1477
        %v1479 = vld [vmem:[%s8] sm:$0xf]
        %v1480 = vld [vmem:[%s8 + $0x4] sm:$0xf]
        %v1481 = vld [vmem:[%s8 + $0x8] sm:$0xf]
        %v1482 = vld [vmem:[%s8 + $0xc] sm:$0xf]
        %v1483 = vpack.c.bf16 %v1478, %v1478
        %v1484 = vld [vmem:[%s9] sm:$0xff]
        %v1485 = vld [vmem:[%s9 + $0x8] sm:$0xff]
        %v1486 = vld [vmem:[%s9 + $0x10] sm:$0xff]
        %v1487 = vld [vmem:[%s9 + $0x18] sm:$0xff]
        %1489 = vset.pattern.permute.xlu0 0
        %1490 = vperm.xlu0 %1489, %v1484
        %v1491 = vpop.permute.xlu0 %1490
        %1494 = vset.pattern.permute.xlu0 0
        %1495 = vperm.xlu0 %1494, %v1485
        %v1496 = vpop.permute.xlu0 %1495
        %1499 = vset.pattern.permute.xlu0 0
        %1500 = vperm.xlu0 %1499, %v1486
        %v1501 = vpop.permute.xlu0 %1500
        %1504 = vset.pattern.permute.xlu0 0
        %1505 = vperm.xlu0 %1504, %v1487
        %v1506 = vpop.permute.xlu0 %1505
        %v1512 = vunpack.c.l.b16 %v1479
        %v1513 = vunpack.c.l.b16 %v1480
        %v1514 = vunpack.c.l.b16 %v1481
        %v1515 = vunpack.c.l.b16 %v1482
        %v1516 = vpack.c.b16 %v1513, %v1512
        %v1517 = vpack.c.b16 %v1515, %v1514
        %v1519 = vsel %vm790, %v1516, 0
        %v1522 = vsel %vm790, %v1517, 0
        %v1525 = vsel %vm790, %v1483, 0
        %1527 = vmatpush.bf16.xpose.msra.mxu0 0
        %1528 = vmatpush.bf16.xpose.msra.mxu0 0
        %1529 = vmatpush.bf16.xpose.msra.mxu0 0
        %1530 = vmatpush.bf16.xpose.msra.mxu0 0
        %1531 = vmatpush.bf16.xpose.msra.mxu0 0
        %1532 = vmatpush.bf16.xpose.msra.mxu0 0
        %1533 = vmatpush.bf16.xpose.msra.mxu0 0
        %1534 = vmatpush.bf16.xpose.msra.mxu0 %v1525
        %1535 = vmatmul.bf16.gmra.mxu0 %v1519
        %v1536 = vpop.f32.mrf.mxu0
        %v1537 = vadd.f32 %v1491, %v1536
        %v1538 = vpop.f32.mrf.mxu0
        %v1539 = vadd.f32 %v1496, %v1538
        %1540 = vmatmul.bf16.gmra.mxu0 %v1522
        %v1541 = vpop.f32.mrf.mxu0
        %v1542 = vadd.f32 %v1501, %v1541
        %v1543 = vpop.f32.mrf.mxu0
        %v1544 = vadd.f32 %v1506, %v1543
        %1545 = vdwg.mxu0
        %v1546 = vld [vmem:[%s10] sm:$0xf]
        %v1547 = vld [vmem:[%s10 + $0x4] sm:$0xf]
        %v1548 = vld [vmem:[%s10 + $0x8] sm:$0xf]
        %v1549 = vld [vmem:[%s10 + $0xc] sm:$0xf]
        %v1550 = vld [vmem:[%s10 + $0x10] sm:$0xf]
        %v1551 = vld [vmem:[%s10 + $0x14] sm:$0xf]
        %v1552 = vld [vmem:[%s10 + $0x18] sm:$0xf]
        %v1553 = vld [vmem:[%s10 + $0x1c] sm:$0xf]
        %v1554 = vpack.c.bf16 %v789, %v789
        %v1555 = vld [vmem:[%s11] sm:$0xff]
        %v1556 = vld [vmem:[%s11 + $0x8] sm:$0xff]
        %v1557 = vld [vmem:[%s11 + $0x10] sm:$0xff]
        %v1558 = vld [vmem:[%s11 + $0x18] sm:$0xff]
        %v1559 = vld [vmem:[%s11 + $0x20] sm:$0xff]
        %v1560 = vld [vmem:[%s11 + $0x28] sm:$0xff]
        %v1561 = vld [vmem:[%s11 + $0x30] sm:$0xff]
        %v1562 = vld [vmem:[%s11 + $0x38] sm:$0xff]
        %1564 = vset.pattern.permute.xlu0 0
        %1565 = vperm.xlu0 %1564, %v1555
        %v1566 = vpop.permute.xlu0 %1565
        %1569 = vset.pattern.permute.xlu0 0
        %1570 = vperm.xlu0 %1569, %v1556
        %v1571 = vpop.permute.xlu0 %1570
        %1574 = vset.pattern.permute.xlu0 0
        %1575 = vperm.xlu0 %1574, %v1557
        %v1576 = vpop.permute.xlu0 %1575
        %1579 = vset.pattern.permute.xlu0 0
        %1580 = vperm.xlu0 %1579, %v1558
        %v1581 = vpop.permute.xlu0 %1580
        %1584 = vset.pattern.permute.xlu0 0
        %1585 = vperm.xlu0 %1584, %v1559
        %v1586 = vpop.permute.xlu0 %1585
        %1589 = vset.pattern.permute.xlu0 0
        %1590 = vperm.xlu0 %1589, %v1560
        %v1591 = vpop.permute.xlu0 %1590
        %1594 = vset.pattern.permute.xlu0 0
        %1595 = vperm.xlu0 %1594, %v1561
        %v1596 = vpop.permute.xlu0 %1595
        %1599 = vset.pattern.permute.xlu0 0
        %1600 = vperm.xlu0 %1599, %v1562
        %v1601 = vpop.permute.xlu0 %1600
        %v1611 = vunpack.c.l.b16 %v1546
        %v1612 = vunpack.c.l.b16 %v1547
        %v1613 = vunpack.c.l.b16 %v1548
        %v1614 = vunpack.c.l.b16 %v1549
        %v1615 = vunpack.c.l.b16 %v1550
        %v1616 = vunpack.c.l.b16 %v1551
        %v1617 = vunpack.c.l.b16 %v1552
        %v1618 = vunpack.c.l.b16 %v1553
        %v1619 = vpack.c.b16 %v1612, %v1611
        %v1620 = vpack.c.b16 %v1614, %v1613
        %v1621 = vpack.c.b16 %v1616, %v1615
        %v1622 = vpack.c.b16 %v1618, %v1617
        %v1624 = vsel %vm790, %v1619, 0
        %v1627 = vsel %vm790, %v1620, 0
        %v1630 = vsel %vm790, %v1621, 0
        %v1633 = vsel %vm790, %v1622, 0
        %v1636 = vsel %vm790, %v1554, 0
        %1638 = vmatpush.bf16.xpose.msra.mxu0 0
        %1639 = vmatpush.bf16.xpose.msra.mxu0 0
        %1640 = vmatpush.bf16.xpose.msra.mxu0 0
        %1641 = vmatpush.bf16.xpose.msra.mxu0 0
        %1642 = vmatpush.bf16.xpose.msra.mxu0 0
        %1643 = vmatpush.bf16.xpose.msra.mxu0 0
        %1644 = vmatpush.bf16.xpose.msra.mxu0 0
        %1645 = vmatpush.bf16.xpose.msra.mxu0 %v1636
        %1646 = vmatmul.bf16.gmra.mxu0 %v1624
        %v1647 = vpop.f32.mrf.mxu0
        %v1648 = vadd.f32 %v1566, %v1647
        %v1649 = vpop.f32.mrf.mxu0
        %v1650 = vadd.f32 %v1571, %v1649
        %1651 = vmatmul.bf16.gmra.mxu0 %v1627
        %v1652 = vpop.f32.mrf.mxu0
        %v1653 = vadd.f32 %v1576, %v1652
        %v1654 = vpop.f32.mrf.mxu0
        %v1655 = vadd.f32 %v1581, %v1654
        %1656 = vmatmul.bf16.gmra.mxu0 %v1630
        %v1657 = vpop.f32.mrf.mxu0
        %v1658 = vadd.f32 %v1586, %v1657
        %v1659 = vpop.f32.mrf.mxu0
        %v1660 = vadd.f32 %v1591, %v1659
        %1661 = vmatmul.bf16.gmra.mxu0 %v1633
        %v1662 = vpop.f32.mrf.mxu0
        %v1663 = vadd.f32 %v1596, %v1662
        %v1664 = vpop.f32.mrf.mxu0
        %v1665 = vadd.f32 %v1601, %v1664
        %1666 = vdwg.mxu0
        %v1667 = vld [vmem:[%s784] sm:$0xf]
        %1668 = vxpose.xlu0.b32.start [1/16] %v1537, 128
        %1669 = vxpose.xlu0.b32.cont [2/16] 0.0, 128
        %1670 = vxpose.xlu0.b32.cont [3/16] 0.0, 128
        %1671 = vxpose.xlu0.b32.cont [4/16] 0.0, 128
        %1672 = vxpose.xlu0.b32.cont [5/16] 0.0, 128
        %1673 = vxpose.xlu0.b32.cont [6/16] 0.0, 128
        %1674 = vxpose.xlu0.b32.cont [7/16] 0.0, 128
        %1675 = vxpose.xlu0.b32.cont [8/16] 0.0, 128
        %1676 = vxpose.xlu0.b32.cont [9/16] 0.0, 128
        %1677 = vxpose.xlu0.b32.cont [10/16] 0.0, 128
        %1678 = vxpose.xlu0.b32.cont [11/16] 0.0, 128
        %1679 = vxpose.xlu0.b32.cont [12/16] 0.0, 128
        %1680 = vxpose.xlu0.b32.cont [13/16] 0.0, 128
        %1681 = vxpose.xlu0.b32.cont [14/16] 0.0, 128
        %1682 = vxpose.xlu0.b32.cont [15/16] 0.0, 128
        %1683 = vxpose.xlu0.b32.end [16/16] 0.0, 128
        %v1684 = vpop.trf.xlu0
        %v1685 = vpop.trf.xlu0
        %v1686 = vpop.trf.xlu0
        %v1687 = vpop.trf.xlu0
        %v1688 = vpop.trf.xlu0
        %v1689 = vpop.trf.xlu0
        %v1690 = vpop.trf.xlu0
        %v1691 = vpop.trf.xlu0
        %v1692 = vpop.trf.xlu0
        %v1693 = vpop.trf.xlu0
        %v1694 = vpop.trf.xlu0
        %v1695 = vpop.trf.xlu0
        %v1696 = vpop.trf.xlu0
        %v1697 = vpop.trf.xlu0
        %v1698 = vpop.trf.xlu0
        %v1699 = vpop.trf.xlu0
        %1700 = vxpose.xlu0.b32.start [1/16] %v1539, 128
        %1701 = vxpose.xlu0.b32.cont [2/16] 0.0, 128
        %1702 = vxpose.xlu0.b32.cont [3/16] 0.0, 128
        %1703 = vxpose.xlu0.b32.cont [4/16] 0.0, 128
        %1704 = vxpose.xlu0.b32.cont [5/16] 0.0, 128
        %1705 = vxpose.xlu0.b32.cont [6/16] 0.0, 128
        %1706 = vxpose.xlu0.b32.cont [7/16] 0.0, 128
        %1707 = vxpose.xlu0.b32.cont [8/16] 0.0, 128
        %1708 = vxpose.xlu0.b32.cont [9/16] 0.0, 128
        %1709 = vxpose.xlu0.b32.cont [10/16] 0.0, 128
        %1710 = vxpose.xlu0.b32.cont [11/16] 0.0, 128
        %1711 = vxpose.xlu0.b32.cont [12/16] 0.0, 128
        %1712 = vxpose.xlu0.b32.cont [13/16] 0.0, 128
        %1713 = vxpose.xlu0.b32.cont [14/16] 0.0, 128
        %1714 = vxpose.xlu0.b32.cont [15/16] 0.0, 128
        %1715 = vxpose.xlu0.b32.end [16/16] 0.0, 128
        %v1716 = vpop.trf.xlu0
        %v1717 = vpop.trf.xlu0
        %v1718 = vpop.trf.xlu0
        %v1719 = vpop.trf.xlu0
        %v1720 = vpop.trf.xlu0
        %v1721 = vpop.trf.xlu0
        %v1722 = vpop.trf.xlu0
        %v1723 = vpop.trf.xlu0
        %v1724 = vpop.trf.xlu0
        %v1725 = vpop.trf.xlu0
        %v1726 = vpop.trf.xlu0
        %v1727 = vpop.trf.xlu0
        %v1728 = vpop.trf.xlu0
        %v1729 = vpop.trf.xlu0
        %v1730 = vpop.trf.xlu0
        %v1731 = vpop.trf.xlu0
        %1732 = vxpose.xlu0.b32.start [1/16] %v1542, 128
        %1733 = vxpose.xlu0.b32.cont [2/16] 0.0, 128
        %1734 = vxpose.xlu0.b32.cont [3/16] 0.0, 128
        %1735 = vxpose.xlu0.b32.cont [4/16] 0.0, 128
        %1736 = vxpose.xlu0.b32.cont [5/16] 0.0, 128
        %1737 = vxpose.xlu0.b32.cont [6/16] 0.0, 128
        %1738 = vxpose.xlu0.b32.cont [7/16] 0.0, 128
        %1739 = vxpose.xlu0.b32.cont [8/16] 0.0, 128
        %1740 = vxpose.xlu0.b32.cont [9/16] 0.0, 128
        %1741 = vxpose.xlu0.b32.cont [10/16] 0.0, 128
        %1742 = vxpose.xlu0.b32.cont [11/16] 0.0, 128
        %1743 = vxpose.xlu0.b32.cont [12/16] 0.0, 128
        %1744 = vxpose.xlu0.b32.cont [13/16] 0.0, 128
        %1745 = vxpose.xlu0.b32.cont [14/16] 0.0, 128
        %1746 = vxpose.xlu0.b32.cont [15/16] 0.0, 128
        %1747 = vxpose.xlu0.b32.end [16/16] 0.0, 128
        %v1748 = vpop.trf.xlu0
        %v1749 = vpop.trf.xlu0
        %v1750 = vpop.trf.xlu0
        %v1751 = vpop.trf.xlu0
        %v1752 = vpop.trf.xlu0
        %v1753 = vpop.trf.xlu0
        %v1754 = vpop.trf.xlu0
        %v1755 = vpop.trf.xlu0
        %v1756 = vpop.trf.xlu0
        %v1757 = vpop.trf.xlu0
        %v1758 = vpop.trf.xlu0
        %v1759 = vpop.trf.xlu0
        %v1760 = vpop.trf.xlu0
        %v1761 = vpop.trf.xlu0
        %v1762 = vpop.trf.xlu0
        %v1763 = vpop.trf.xlu0
        %1764 = vxpose.xlu0.b32.start [1/16] %v1544, 128
        %1765 = vxpose.xlu0.b32.cont [2/16] 0.0, 128
        %1766 = vxpose.xlu0.b32.cont [3/16] 0.0, 128
        %1767 = vxpose.xlu0.b32.cont [4/16] 0.0, 128
        %1768 = vxpose.xlu0.b32.cont [5/16] 0.0, 128
        %1769 = vxpose.xlu0.b32.cont [6/16] 0.0, 128
        %1770 = vxpose.xlu0.b32.cont [7/16] 0.0, 128
        %1771 = vxpose.xlu0.b32.cont [8/16] 0.0, 128
        %1772 = vxpose.xlu0.b32.cont [9/16] 0.0, 128
        %1773 = vxpose.xlu0.b32.cont [10/16] 0.0, 128
        %1774 = vxpose.xlu0.b32.cont [11/16] 0.0, 128
        %1775 = vxpose.xlu0.b32.cont [12/16] 0.0, 128
        %1776 = vxpose.xlu0.b32.cont [13/16] 0.0, 128
        %1777 = vxpose.xlu0.b32.cont [14/16] 0.0, 128
        %1778 = vxpose.xlu0.b32.cont [15/16] 0.0, 128
        %1779 = vxpose.xlu0.b32.end [16/16] 0.0, 128
        %v1780 = vpop.trf.xlu0
        %v1781 = vpop.trf.xlu0
        %v1782 = vpop.trf.xlu0
        %v1783 = vpop.trf.xlu0
        %v1784 = vpop.trf.xlu0
        %v1785 = vpop.trf.xlu0
        %v1786 = vpop.trf.xlu0
        %v1787 = vpop.trf.xlu0
        %v1788 = vpop.trf.xlu0
        %v1789 = vpop.trf.xlu0
        %v1790 = vpop.trf.xlu0
        %v1791 = vpop.trf.xlu0
        %v1792 = vpop.trf.xlu0
        %v1793 = vpop.trf.xlu0
        %v1794 = vpop.trf.xlu0
        %v1795 = vpop.trf.xlu0
        %v1796 = vpack.c.bf16 %v1684, %v1684
        %v1797 = vpack.c.bf16 %v1716, %v1716
        %v1798 = vpack.c.bf16 %v1748, %v1748
        %v1799 = vpack.c.bf16 %v1780, %v1780
        %v1800 = vpack.c.bf16 %v1648, %v1648
        %v1801 = vpack.c.bf16 %v1650, %v1650
        %v1802 = vpack.c.bf16 %v1653, %v1653
        %v1803 = vpack.c.bf16 %v1655, %v1655
        %v1805 = vsel %vm1136, %v1796, 0
        %v1808 = vsel %vm1140, %v1800, 0
        %1810 = vmatpush.bf16.msra.mxu0 0
        %1811 = vmatpush.bf16.msra.mxu0 0
        %1812 = vmatpush.bf16.msra.mxu0 0
        %1813 = vmatpush.bf16.msra.mxu0 0
        %1814 = vmatpush.bf16.msra.mxu0 0
        %1815 = vmatpush.bf16.msra.mxu0 0
        %1816 = vmatpush.bf16.msra.mxu0 0
        %1817 = vmatpush.bf16.msra.mxu0 %v1808
        %1818 = vmatmul.bf16.gmra.mxu0 %v1805
        %v1819 = vpop.f32.mrf.mxu0
        %v1820 = vadd.f32 0.0, %v1819
        %v1821 = vpop.f32.mrf.mxu0
        %1822 = vdwg.mxu0
        %v1824 = vsel %vm1136, %v1797, 0
        %v1827 = vsel %vm1140, %v1801, 0
        %1829 = vmatpush.bf16.msra.mxu0 0
        %1830 = vmatpush.bf16.msra.mxu0 0
        %1831 = vmatpush.bf16.msra.mxu0 0
        %1832 = vmatpush.bf16.msra.mxu0 0
        %1833 = vmatpush.bf16.msra.mxu0 0
        %1834 = vmatpush.bf16.msra.mxu0 0
        %1835 = vmatpush.bf16.msra.mxu0 0
        %1836 = vmatpush.bf16.msra.mxu0 %v1827
        %1837 = vmatmul.bf16.gmra.mxu0 %v1824
        %v1838 = vpop.f32.mrf.mxu0
        %v1839 = vadd.f32 0.0, %v1838
        %v1840 = vpop.f32.mrf.mxu0
        %1841 = vdwg.mxu0
        %v1843 = vsel %vm1136, %v1798, 0
        %v1846 = vsel %vm1140, %v1802, 0
        %1848 = vmatpush.bf16.msra.mxu0 0
        %1849 = vmatpush.bf16.msra.mxu0 0
        %1850 = vmatpush.bf16.msra.mxu0 0
        %1851 = vmatpush.bf16.msra.mxu0 0
        %1852 = vmatpush.bf16.msra.mxu0 0
        %1853 = vmatpush.bf16.msra.mxu0 0
        %1854 = vmatpush.bf16.msra.mxu0 0
        %1855 = vmatpush.bf16.msra.mxu0 %v1846
        %1856 = vmatmul.bf16.gmra.mxu0 %v1843
        %v1857 = vpop.f32.mrf.mxu0
        %v1858 = vadd.f32 0.0, %v1857
        %v1859 = vpop.f32.mrf.mxu0
        %1860 = vdwg.mxu0
        %v1862 = vsel %vm1136, %v1799, 0
        %v1865 = vsel %vm1140, %v1803, 0
        %1867 = vmatpush.bf16.msra.mxu0 0
        %1868 = vmatpush.bf16.msra.mxu0 0
        %1869 = vmatpush.bf16.msra.mxu0 0
        %1870 = vmatpush.bf16.msra.mxu0 0
        %1871 = vmatpush.bf16.msra.mxu0 0
        %1872 = vmatpush.bf16.msra.mxu0 0
        %1873 = vmatpush.bf16.msra.mxu0 0
        %1874 = vmatpush.bf16.msra.mxu0 %v1865
        %1875 = vmatmul.bf16.gmra.mxu0 %v1862
        %v1876 = vpop.f32.mrf.mxu0
        %v1877 = vadd.f32 0.0, %v1876
        %v1878 = vpop.f32.mrf.mxu0
        %1879 = vdwg.mxu0
        %v1880 = vmul.f32 %v1820, 0.35355338
        %v1881 = vmul.f32 %v1839, 0.35355338
        %v1882 = vmul.f32 %v1858, 0.35355338
        %v1883 = vmul.f32 %v1877, 0.35355338
        %v1884 = vunpack.c.l.bf16 %v1667
        %v1885 = vadd.f32 %v1880, %v1884
        %v1886 = vadd.f32 %v1881, %v1884
        %v1887 = vadd.f32 %v1882, %v1884
        %v1888 = vadd.f32 %v1883, %v1884
        %v1889 = vsel %vm1136, %v1885, -inf
        %1890 = vmax.xlane.f32.xlu0 %v1889
        %v1891 = vpop.xlane.xlu0 %1890
        %v1892 = vsel %vm1136, %v1886, -inf
        %1893 = vmax.xlane.f32.xlu0 %v1892
        %v1894 = vpop.xlane.xlu0 %1893
        %v1895 = vsel %vm1136, %v1887, -inf
        %1896 = vmax.xlane.f32.xlu0 %v1895
        %v1897 = vpop.xlane.xlu0 %1896
        %v1898 = vsel %vm1136, %v1888, -inf
        %1899 = vmax.xlane.f32.xlu0 %v1898
        %v1900 = vpop.xlane.xlu0 %1899
        %v1901 = vsub.f32 %v1885, %v1891
        %v1902 = vsub.f32 %v1886, %v1894
        %v1903 = vsub.f32 %v1887, %v1897
        %v1904 = vsub.f32 %v1888, %v1900
        %v1905 = vmul.f32 %v1901, 1.442695
        %v1906 = vpow.pop %v1905
        %v1907 = vmul.f32 %v1902, 1.442695
        %v1908 = vpow.pop %v1907
        %v1909 = vmul.f32 %v1903, 1.442695
        %v1910 = vpow.pop %v1909
        %v1911 = vmul.f32 %v1904, 1.442695
        %v1912 = vpow.pop %v1911
        %v1913 = vsel %vm1136, %v1906, 0.0
        %1914 = vadd.xlane.f32.xlu0 %v1913
        %v1915 = vpop.xlane.xlu0 %1914
        %v1916 = vsel %vm1136, %v1908, 0.0
        %1917 = vadd.xlane.f32.xlu0 %v1916
        %v1918 = vpop.xlane.xlu0 %1917
        %v1919 = vsel %vm1136, %v1910, 0.0
        %1920 = vadd.xlane.f32.xlu0 %v1919
        %v1921 = vpop.xlane.xlu0 %1920
        %v1922 = vsel %vm1136, %v1912, 0.0
        %1923 = vadd.xlane.f32.xlu0 %v1922
        %v1924 = vpop.xlane.xlu0 %1923
        %v1925 = vrcp.pop %v1915
        %v1926 = vrcp.pop %v1918
        %v1927 = vrcp.pop %v1921
        %v1928 = vrcp.pop %v1924
        %v1929 = vmul.f32 %v1906, %v1925
        %v1930 = vmul.f32 %v1908, %v1926
        %v1931 = vmul.f32 %v1910, %v1927
        %v1932 = vmul.f32 %v1912, %v1928
        %v1933 = vpack.c.bf16 %v1929, %v1929
        %v1934 = vpack.c.bf16 %v1930, %v1930
        %v1935 = vpack.c.bf16 %v1931, %v1931
        %v1936 = vpack.c.bf16 %v1932, %v1932
        %1937 = vst.msk [vmem:[%s761] sm:$0xf] %vm1271, %v1933
        %1938 = vst.msk [vmem:[%s761 + $0x4] sm:$0xf] %vm1271, %v1934
        %1939 = vst.msk [vmem:[%s761 + $0x8] sm:$0xf] %vm1271, %v1935
        %1940 = vst.msk [vmem:[%s761 + $0xc] sm:$0xf] %vm1271, %v1936
        %v1941 = vpack.c.bf16 %v1658, %v1658
        %v1942 = vpack.c.bf16 %v1660, %v1660
        %v1943 = vpack.c.bf16 %v1663, %v1663
        %v1944 = vpack.c.bf16 %v1665, %v1665
        %v1946 = vsel %vm1136, %v1933, 0
        %v1949 = vsel %vm1136, %v1941, 0
        %1951 = vmatpush.bf16.xpose.msra.mxu0 0
        %1952 = vmatpush.bf16.xpose.msra.mxu0 0
        %1953 = vmatpush.bf16.xpose.msra.mxu0 0
        %1954 = vmatpush.bf16.xpose.msra.mxu0 0
        %1955 = vmatpush.bf16.xpose.msra.mxu0 0
        %1956 = vmatpush.bf16.xpose.msra.mxu0 0
        %1957 = vmatpush.bf16.xpose.msra.mxu0 0
        %1958 = vmatpush.bf16.xpose.msra.mxu0 %v1949
        %1959 = vmatmul.bf16.gmra.mxu0 %v1946
        %v1960 = vpop.f32.mrf.mxu0
        %v1961 = vadd.f32 0.0, %v1960
        %v1962 = vpop.f32.mrf.mxu0
        %1963 = vdwg.mxu0
        %v1965 = vsel %vm1136, %v1934, 0
        %v1968 = vsel %vm1136, %v1942, 0
        %1970 = vmatpush.bf16.xpose.msra.mxu0 0
        %1971 = vmatpush.bf16.xpose.msra.mxu0 0
        %1972 = vmatpush.bf16.xpose.msra.mxu0 0
        %1973 = vmatpush.bf16.xpose.msra.mxu0 0
        %1974 = vmatpush.bf16.xpose.msra.mxu0 0
        %1975 = vmatpush.bf16.xpose.msra.mxu0 0
        %1976 = vmatpush.bf16.xpose.msra.mxu0 0
        %1977 = vmatpush.bf16.xpose.msra.mxu0 %v1968
        %1978 = vmatmul.bf16.gmra.mxu0 %v1965
        %v1979 = vpop.f32.mrf.mxu0
        %v1980 = vadd.f32 0.0, %v1979
        %v1981 = vpop.f32.mrf.mxu0
        %1982 = vdwg.mxu0
        %v1984 = vsel %vm1136, %v1935, 0
        %v1987 = vsel %vm1136, %v1943, 0
        %1989 = vmatpush.bf16.xpose.msra.mxu0 0
        %1990 = vmatpush.bf16.xpose.msra.mxu0 0
        %1991 = vmatpush.bf16.xpose.msra.mxu0 0
        %1992 = vmatpush.bf16.xpose.msra.mxu0 0
        %1993 = vmatpush.bf16.xpose.msra.mxu0 0
        %1994 = vmatpush.bf16.xpose.msra.mxu0 0
        %1995 = vmatpush.bf16.xpose.msra.mxu0 0
        %1996 = vmatpush.bf16.xpose.msra.mxu0 %v1987
        %1997 = vmatmul.bf16.gmra.mxu0 %v1984
        %v1998 = vpop.f32.mrf.mxu0
        %v1999 = vadd.f32 0.0, %v1998
        %v2000 = vpop.f32.mrf.mxu0
        %2001 = vdwg.mxu0
        %v2003 = vsel %vm1136, %v1936, 0
        %v2006 = vsel %vm1136, %v1944, 0
        %2008 = vmatpush.bf16.xpose.msra.mxu0 0
        %2009 = vmatpush.bf16.xpose.msra.mxu0 0
        %2010 = vmatpush.bf16.xpose.msra.mxu0 0
        %2011 = vmatpush.bf16.xpose.msra.mxu0 0
        %2012 = vmatpush.bf16.xpose.msra.mxu0 0
        %2013 = vmatpush.bf16.xpose.msra.mxu0 0
        %2014 = vmatpush.bf16.xpose.msra.mxu0 0
        %2015 = vmatpush.bf16.xpose.msra.mxu0 %v2006
        %2016 = vmatmul.bf16.gmra.mxu0 %v2003
        %v2017 = vpop.f32.mrf.mxu0
        %v2018 = vadd.f32 0.0, %v2017
        %v2019 = vpop.f32.mrf.mxu0
        %2020 = vdwg.mxu0
        %v2021 = vpack.c.bf16 %v1961, %v1961
        %v2022 = vpack.c.bf16 %v1980, %v1980
        %v2023 = vpack.c.bf16 %v1999, %v1999
        %v2024 = vpack.c.bf16 %v2018, %v2018
        %v2025 = vld [vmem:[%s12] sm:$0xf]
        %v2026 = vld [vmem:[%s12 + $0x4] sm:$0xf]
        %v2027 = vld [vmem:[%s12 + $0x8] sm:$0xf]
        %v2028 = vld [vmem:[%s12 + $0xc] sm:$0xf]
        %v2030 = vsel %vm1136, %v2021, 0
        %v2033 = vsel %vm1140, %v2025, 0
        %2035 = vmatpush.bf16.msra.mxu0 0
        %2036 = vmatpush.bf16.msra.mxu0 0
        %2037 = vmatpush.bf16.msra.mxu0 0
        %2038 = vmatpush.bf16.msra.mxu0 0
        %2039 = vmatpush.bf16.msra.mxu0 0
        %2040 = vmatpush.bf16.msra.mxu0 0
        %2041 = vmatpush.bf16.msra.mxu0 0
        %2042 = vmatpush.bf16.msra.mxu0 %v2033
        %2043 = vmatmul.bf16.gmra.mxu0 %v2030
        %v2044 = vpop.f32.mrf.mxu0
        %v2045 = vadd.f32 0.0, %v2044
        %v2046 = vpop.f32.mrf.mxu0
        %2047 = vdwg.mxu0
        %v2049 = vsel %vm1136, %v2022, 0
        %v2052 = vsel %vm1140, %v2026, 0
        %2054 = vmatpush.bf16.msra.mxu0 0
        %2055 = vmatpush.bf16.msra.mxu0 0
        %2056 = vmatpush.bf16.msra.mxu0 0
        %2057 = vmatpush.bf16.msra.mxu0 0
        %2058 = vmatpush.bf16.msra.mxu0 0
        %2059 = vmatpush.bf16.msra.mxu0 0
        %2060 = vmatpush.bf16.msra.mxu0 0
        %2061 = vmatpush.bf16.msra.mxu0 %v2052
        %2062 = vmatmul.bf16.gmra.mxu0 %v2049
        %v2063 = vpop.f32.mrf.mxu0
        %v2064 = vadd.f32 0.0, %v2063
        %v2065 = vpop.f32.mrf.mxu0
        %2066 = vdwg.mxu0
        %v2068 = vsel %vm1136, %v2023, 0
        %v2071 = vsel %vm1140, %v2027, 0
        %2073 = vmatpush.bf16.msra.mxu0 0
        %2074 = vmatpush.bf16.msra.mxu0 0
        %2075 = vmatpush.bf16.msra.mxu0 0
        %2076 = vmatpush.bf16.msra.mxu0 0
        %2077 = vmatpush.bf16.msra.mxu0 0
        %2078 = vmatpush.bf16.msra.mxu0 0
        %2079 = vmatpush.bf16.msra.mxu0 0
        %2080 = vmatpush.bf16.msra.mxu0 %v2071
        %2081 = vmatmul.bf16.gmra.mxu0 %v2068
        %v2082 = vpop.f32.mrf.mxu0
        %v2083 = vadd.f32 0.0, %v2082
        %v2084 = vpop.f32.mrf.mxu0
        %2085 = vdwg.mxu0
        %v2087 = vsel %vm1136, %v2024, 0
        %v2090 = vsel %vm1140, %v2028, 0
        %2092 = vmatpush.bf16.msra.mxu0 0
        %2093 = vmatpush.bf16.msra.mxu0 0
        %2094 = vmatpush.bf16.msra.mxu0 0
        %2095 = vmatpush.bf16.msra.mxu0 0
        %2096 = vmatpush.bf16.msra.mxu0 0
        %2097 = vmatpush.bf16.msra.mxu0 0
        %2098 = vmatpush.bf16.msra.mxu0 0
        %2099 = vmatpush.bf16.msra.mxu0 %v2090
        %2100 = vmatmul.bf16.gmra.mxu0 %v2087
        %v2101 = vpop.f32.mrf.mxu0
        %v2102 = vadd.f32 0.0, %v2101
        %v2103 = vpop.f32.mrf.mxu0
        %2104 = vdwg.mxu0
        %v2105 = vsel %vm790, %v2045, 0.0
        %v2106 = vsel %vm790, %v2064, 0.0
        %v2107 = vadd.f32 %v2105, %v2106
        %v2108 = vsel %vm790, %v2083, 0.0
        %v2109 = vadd.f32 %v2107, %v2108
        %v2110 = vsel %vm790, %v2102, 0.0
        %v2111 = vadd.f32 %v2109, %v2110
        %v2112 = vld [vmem:[%s13] sm:$0x1]
        %v2114 = vperm.slane %v2112, 0
        %v2116 = vadd.f32 %v2111, %v2114
        %v2117 = vadd.f32 %v1452, %v2116
        %v2118 = vsel %vm790, %v2117, 0.0
        %2119 = vadd.xlane.f32.xlu0 %v2118
        %v2120 = vpop.xlane.xlu0 %2119
        %v2121 = vmul.f32 %v2120, %v800
        %v2122 = vsub.f32 %v2117, %v2121
        %v2123 = vmul.f32 %v2122, %v2122
        %v2124 = vsel %vm790, %v2123, 0.0
        %2125 = vadd.xlane.f32.xlu0 %v2124
        %v2126 = vpop.xlane.xlu0 %2125
        %v2127 = vmul.f32 %v2126, %v800
        %v2128 = vadd.f32 %v2127, 1e-05
        %v2129 = vrsqrt.pop %v2128
        %v2130 = vmul.f32 %v2129, %v2128
        %v2131 = vmul.f32 %v2130, %v2129
        %v2132 = vmul.f32 0.5, %v2131
        %v2133 = vsub.f32 1.5, %v2132
        %v2134 = vmul.f32 %v2129, %v2133
        %vm2135 = vweird.f32 %v2128
        %vm2136 = vweird.f32 %v2129
        %vm2137 = vmor %vm2135, %vm2136
        %v2138 = vsel %vm2137, %v2129, %v2134
        %v2139 = vmul.f32 %v2122, %v2138
        %v2140 = vperm.slane %v786, 2
        %v2141 = vmul.f32 %v2139, %v2140
        %v2142 = vperm.slane %v787, 2
        %v2143 = vadd.f32 %v2141, %v2142
        %v2144 = vpack.c.bf16 %v2143, %v2143
        %v2145 = vld [vmem:[%s14] sm:$0xf]
        %v2146 = vld [vmem:[%s14 + $0x4] sm:$0xf]
        %v2147 = vld [vmem:[%s14 + $0x8] sm:$0xf]
        %v2148 = vld [vmem:[%s14 + $0xc] sm:$0xf]
        %v2149 = vld [vmem:[%s15] sm:$0x1]
        %v2151 = vperm.slane %v2149, 0
        %v2157 = vunpack.c.l.b16 %v2145
        %v2158 = vunpack.c.l.b16 %v2146
        %v2159 = vunpack.c.l.b16 %v2147
        %v2160 = vunpack.c.l.b16 %v2148
        %v2161 = vpack.c.b16 %v2158, %v2157
        %v2162 = vpack.c.b16 %v2160, %v2159
        %v2166 = vsel %vm790, %v2144, 0
        %2168 = vmatpush.bf16.msra.mxu0 0
        %2169 = vmatpush.bf16.msra.mxu0 0
        %2170 = vmatpush.bf16.msra.mxu0 0
        %2171 = vmatpush.bf16.msra.mxu0 0
        %2172 = vmatpush.bf16.msra.mxu0 0
        %2173 = vmatpush.bf16.msra.mxu0 0
        %2174 = vmatpush.bf16.msra.mxu0 %v2162
        %2175 = vmatpush.bf16.msra.mxu0 %v2161
        %2176 = vmatmul.bf16.gmra.mxu0 %v2166
        %v2177 = vpop.f32.mrf.mxu0
        %v2178 = vadd.f32 %v2151, %v2177
        %v2179 = vpop.f32.mrf.mxu0
        %2180 = vdwg.mxu0
        %v2181 = vmax.f32 %v2178, 0.0
        %v2182 = vpack.c.bf16 %v2181, %v2181
        %v2183 = vld [vmem:[%s16] sm:$0xf]
        %v2184 = vld [vmem:[%s16 + $0x4] sm:$0xf]
        %v2185 = vld [vmem:[%s16 + $0x8] sm:$0xf]
        %v2186 = vld [vmem:[%s16 + $0xc] sm:$0xf]
        %v2187 = vld [vmem:[%s16 + $0x10] sm:$0xf]
        %v2188 = vld [vmem:[%s16 + $0x14] sm:$0xf]
        %v2189 = vld [vmem:[%s16 + $0x18] sm:$0xf]
        %v2190 = vld [vmem:[%s16 + $0x1c] sm:$0xf]
        %v2191 = vld [vmem:[%s17] sm:$0x1]
        %v2193 = vperm.slane %v2191, 0
        %v2203 = vunpack.c.l.b16 %v2183
        %v2204 = vunpack.c.l.b16 %v2184
        %v2205 = vunpack.c.l.b16 %v2185
        %v2206 = vunpack.c.l.b16 %v2186
        %v2207 = vunpack.c.l.b16 %v2187
        %v2208 = vunpack.c.l.b16 %v2188
        %v2209 = vunpack.c.l.b16 %v2189
        %v2210 = vunpack.c.l.b16 %v2190
        %v2211 = vpack.c.b16 %v2204, %v2203
        %v2212 = vpack.c.b16 %v2206, %v2205
        %v2213 = vpack.c.b16 %v2208, %v2207
        %v2214 = vpack.c.b16 %v2210, %v2209
        %vm2219 = vcmask 523264
        %v2221 = vsel %vm2219, %v2182, 0
        %2223 = vmatpush.bf16.msra.mxu0 0
        %2224 = vmatpush.bf16.msra.mxu0 0
        %2225 = vmatpush.bf16.msra.mxu0 0
        %2226 = vmatpush.bf16.msra.mxu0 0
        %2227 = vmatpush.bf16.msra.mxu0 %v2214
        %2228 = vmatpush.bf16.msra.mxu0 %v2213
        %2229 = vmatpush.bf16.msra.mxu0 %v2212
        %2230 = vmatpush.bf16.msra.mxu0 %v2211
        %2231 = vmatmul.bf16.gmra.mxu0 %v2221
        %v2232 = vpop.f32.mrf.mxu0
        %v2233 = vadd.f32 %v2193, %v2232
        %v2234 = vpop.f32.mrf.mxu0
        %2235 = vdwg.mxu0
        %2236 = vst.msk [vmem:[%s768] sm:$0xff] %vm790, %v2233
        %v2237 = vadd.f32 %v2117, %v2233
        %v2238 = vsel %vm790, %v2237, 0.0
        %2239 = vadd.xlane.f32.xlu0 %v2238
        %v2240 = vpop.xlane.xlu0 %2239
        %v2241 = vmul.f32 %v2240, %v800
        %v2242 = vsub.f32 %v2237, %v2241
        %v2243 = vmul.f32 %v2242, %v2242
        %v2244 = vsel %vm790, %v2243, 0.0
        %2245 = vadd.xlane.f32.xlu0 %v2244
        %v2246 = vpop.xlane.xlu0 %2245
        %v2247 = vmul.f32 %v2246, %v800
        %v2248 = vadd.f32 %v2247, 1e-05
        %v2249 = vrsqrt.pop %v2248
        %v2250 = vmul.f32 %v2249, %v2248
        %v2251 = vmul.f32 %v2250, %v2249
        %v2252 = vmul.f32 0.5, %v2251
        %v2253 = vsub.f32 1.5, %v2252
        %v2254 = vmul.f32 %v2249, %v2253
        %vm2255 = vweird.f32 %v2248
        %vm2256 = vweird.f32 %v2249
        %vm2257 = vmor %vm2255, %vm2256
        %v2258 = vsel %vm2257, %v2249, %v2254
        %v2259 = vmul.f32 %v2242, %v2258
        %v2260 = vperm.slane %v786, 3
        %v2261 = vmul.f32 %v2259, %v2260
        %v2262 = vperm.slane %v787, 3
        %v2263 = vadd.f32 %v2261, %v2262
        %2264 = vst.msk [vmem:[%s747] sm:$0xff] %vm790, %v2263
        %s2265 = sand.u32 %s492, 1
        %s2266 = scalar_lea.sflag [#allocation3], %s2265
        %s2267 = sand.u32 %s492, 1
        %s2268 = smul.addr %s2267, 8
        %s2269 = scalar_lea.vmem [#allocation2], %s2268
        %s2270 = sand.u32 %s44, 1
        %s2271 = scalar_lea.sflag [#allocation5], %s2270
        %s2272 = sand.u32 %s518, 1
        %s2273 = smul.addr %s2272, 16
        %s2274 = scalar_lea.vmem [#allocation4], %s2273
        %s2275 = sand.u32 %s44, 1
        %s2276 = scalar_lea.sflag [#allocation5], %s2275
        %s2277 = sand.u32 %s544, 1
        %s2278 = smul.addr %s2277, 16
        %s2279 = scalar_lea.vmem [#allocation6], %s2278
        %s2280 = sand.u32 %s570, 1
        %s2281 = scalar_lea.sflag [#allocation8], %s2280
        %s2282 = sand.u32 %s570, 1
        %s2283 = smul.addr %s2282, 8
        %s2284 = scalar_lea.vmem [#allocation7], %s2283
        // Predicated region
        $region101: #{tpu_custom_call.1} parent=99 // pred_check
          %p2285 = pneg %p502
        $region102: #{tpu_custom_call.1} parent=99 // pred_check_branch
          %2287 = sbr.rel (%p2285) target = $region104
        $region103: #{tpu_custom_call.1} parent=99 // pred_region
          %2289 = vsyncadd %s2266, 0
          %s2290 = smul.addr %s44, 8
          %s2291 = scalar_lea.hbm %s20, %s2290
          %s2293 = sshll.u32 %s2269, 4
          %s2294 = int_to_ptr.vmem [resolvable:$true] %s2293
          %s2295 = sshll.u32 %s2291, 4
          %s2296 = int_to_ptr.hbm [resolvable:$true] %s2295
          %2298 = dma.vmem_to_hbm [thread:$0]  %s2294, 128, %s2296, %s2266
        $region104: #{tpu_custom_call.1} parent=99 // pred_fallthru
          _
        // Predicated region
        $region105: #{tpu_custom_call.1} parent=99 // pred_check
          %p2299 = pneg %p528
        $region106: #{tpu_custom_call.1} parent=99 // pred_check_branch
          %2301 = sbr.rel (%p2299) target = $region108
        $region107: #{tpu_custom_call.1} parent=99 // pred_region
          %2303 = vsyncadd %s2271, 0
          %s2304 = smul.addr %s44, 4
          %s2305 = smul.addr %s2304, 4
          %s2306 = scalar_lea.hbm %s21, %s2305
          %s2307 = sshll.u32 %s2274, 4
          %s2308 = int_to_ptr.vmem [resolvable:$true] %s2307
          %s2309 = sshll.u32 %s2306, 4
          %s2310 = int_to_ptr.hbm [resolvable:$true] %s2309
          %2315 = dma.vmem_to_hbm [thread:$0]  %s2308, 256, %s2310, %s2271, 64, 64, 4
        $region108: #{tpu_custom_call.1} parent=99 // pred_fallthru
          _
        // Predicated region
        $region109: #{tpu_custom_call.1} parent=99 // pred_check
          %p2316 = pneg %p554
        $region110: #{tpu_custom_call.1} parent=99 // pred_check_branch
          %2318 = sbr.rel (%p2316) target = $region112
        $region111: #{tpu_custom_call.1} parent=99 // pred_region
          %2320 = vsyncadd %s2276, 0
          %s2321 = smul.addr %s44, 4
          %s2322 = smul.addr %s2321, 4
          %s2323 = scalar_lea.hbm %s22, %s2322
          %s2324 = sshll.u32 %s2279, 4
          %s2325 = int_to_ptr.vmem [resolvable:$true] %s2324
          %s2326 = sshll.u32 %s2323, 4
          %s2327 = int_to_ptr.hbm [resolvable:$true] %s2326
          %2332 = dma.vmem_to_hbm [thread:$0]  %s2325, 256, %s2327, %s2276, 64, 64, 4
        $region112: #{tpu_custom_call.1} parent=99 // pred_fallthru
          _
        // Predicated region
        $region113: #{tpu_custom_call.1} parent=99 // pred_check
          %p2333 = pneg %p580
        $region114: #{tpu_custom_call.1} parent=99 // pred_check_branch
          %2335 = sbr.rel (%p2333) target = $region116
        $region115: #{tpu_custom_call.1} parent=99 // pred_region
          %2337 = vsyncadd %s2281, 0
          %s2338 = smul.addr %s44, 8
          %s2339 = scalar_lea.hbm %s23, %s2338
          %s2341 = sshll.u32 %s2284, 4
          %s2342 = int_to_ptr.vmem [resolvable:$true] %s2341
          %s2343 = sshll.u32 %s2339, 4
          %s2344 = int_to_ptr.hbm [resolvable:$true] %s2343
          %2346 = dma.vmem_to_hbm [thread:$0]  %s2342, 128, %s2344, %s2281
        $region116: #{tpu_custom_call.1} parent=99 // pred_fallthru
          _
      $region100: #{tpu_custom_call.1} parent=5 // pred_fallthru
        _
      %p2347 = scmp.le.s32.totalorder 2, %s39
      // Predicated region
      $region117: #{tpu_custom_call.1} parent=5 // pred_check
        %p2348 = pneg %p2347
      $region118: #{tpu_custom_call.1} parent=5 // pred_check_branch
        %2350 = sbr.rel (%p2348) target = $region120
      $region119: #{tpu_custom_call.1} parent=5 // pred_region
        %s2351 = ssub.s32 %s39, 2
        // Predicated region
        $region121: #{tpu_custom_call.1} parent=119 // pred_check
          %p2352 = pneg %p508
        $region122: #{tpu_custom_call.1} parent=119 // pred_check_branch
          %2354 = sbr.rel (%p2352) target = $region124
        $region123: #{tpu_custom_call.1} parent=119 // pred_region
          %s2355 = sand.u32 %s493, 1
          %s2356 = scalar_lea.sflag [#allocation3], %s2355
          %s2357 = sand.u32 %s493, 1
          %s2358 = smul.addr %s2357, 8
          %s2359 = scalar_lea.vmem [#allocation2], %s2358
          %2361 = dma.done %s2356, 128
        $region124: #{tpu_custom_call.1} parent=119 // pred_fallthru
          _
        // Predicated region
        $region125: #{tpu_custom_call.1} parent=119 // pred_check
          %p2362 = pneg %p534
        $region126: #{tpu_custom_call.1} parent=119 // pred_check_branch
          %2364 = sbr.rel (%p2362) target = $region128
        $region127: #{tpu_custom_call.1} parent=119 // pred_region
          %s2365 = sand.u32 %s45, 1
          %s2366 = scalar_lea.sflag [#allocation5], %s2365
          %s2367 = sand.u32 %s519, 1
          %s2368 = smul.addr %s2367, 16
          %s2369 = scalar_lea.vmem [#allocation4], %s2368
          %2371 = dma.done %s2366, 256
        $region128: #{tpu_custom_call.1} parent=119 // pred_fallthru
          _
        // Predicated region
        $region129: #{tpu_custom_call.1} parent=119 // pred_check
          %p2372 = pneg %p560
        $region130: #{tpu_custom_call.1} parent=119 // pred_check_branch
          %2374 = sbr.rel (%p2372) target = $region132
        $region131: #{tpu_custom_call.1} parent=119 // pred_region
          %s2375 = sand.u32 %s45, 1
          %s2376 = scalar_lea.sflag [#allocation5], %s2375
          %s2377 = sand.u32 %s545, 1
          %s2378 = smul.addr %s2377, 16
          %s2379 = scalar_lea.vmem [#allocation6], %s2378
          %2381 = dma.done %s2376, 256
        $region132: #{tpu_custom_call.1} parent=119 // pred_fallthru
          _
        // Predicated region
        $region133: #{tpu_custom_call.1} parent=119 // pred_check
          %p2382 = pneg %p586
        $region134: #{tpu_custom_call.1} parent=119 // pred_check_branch
          %2384 = sbr.rel (%p2382) target = $region136
        $region135: #{tpu_custom_call.1} parent=119 // pred_region
          %s2385 = sand.u32 %s571, 1
          %s2386 = scalar_lea.sflag [#allocation8], %s2385
          %s2387 = sand.u32 %s571, 1
          %s2388 = smul.addr %s2387, 8
          %s2389 = scalar_lea.vmem [#allocation7], %s2388
          %2391 = dma.done %s2386, 128
        $region136: #{tpu_custom_call.1} parent=119 // pred_fallthru
          _
      $region120: #{tpu_custom_call.1} parent=5 // pred_fallthru
        _
    $region6: #{tpu_custom_call.1} parent=1 // loop_footer
      %s43 = sadd.s32 1, %s39
    $region7: #{tpu_custom_call.1} parent=1 // loop_footer_branch
      %38 = sbr.rel target = $region3
    $region8: #{tpu_custom_call.1} parent=1 // loop_exit
      _
    %2392 = vsyncpa [#allocation3], 1
    %s2393 = scalar_lea.sflag [#allocation3], 1
    %2394 = vsyncpa %s2393, 1
    %2395 = vsyncpa [#allocation5], 1
    %s2396 = scalar_lea.sflag [#allocation5], 1
    %2397 = vsyncpa %s2396, 1
    %2398 = vsyncpa [#allocation8], 1
    %s2399 = scalar_lea.sflag [#allocation8], 1
    %2400 = vsyncpa %s2399, 1

</llo_original>
